<compile_context>
chip_gen: v5e
topology: v5e:2x2
jax: 0.10.0
libtpu: 0.0.40
codegen_flags: <defaults>
</compile_context>

<pallas_src>
import math
import functools

import jax
import jax.numpy as jnp
import numpy as np
from jax.experimental import pallas as pl
from jax.experimental.pallas import tpu as pltpu


# ------------------------------- fused kernel -------------------------------

def _fused_geometry_kernel(idxb_ref, i2_ref,                          # scalar prefetch (SMEM)
                           fm_ref, fp_ref, xrep_ref, freq_ref, off_ref, w_ref, bias_ref,
                           geom_ref, pe_ref, glob_ref,
                           *, n_obj, c_back):
    """One grid step == one batch element.  In a single kernel:
      1. exact row gather: geom[k] = [fm[idx_back[k]], fp[I2[k]]]  -> one full-tile store
      2. sinusoidal PE for K object boxes + 1 scene box: sin(x*freq + off) (constants resident)
      3. global_geom = relu(Linear([mean_M(fm), scene_PE]))        (split matmul == concat+Linear)
    fm is DMA'd into VMEM once per batch and reused by (1) and (3)."""
    b = pl.program_id(0)

    # ---- 1. per-object geometry features: exact row gather, single lane-dense store ----
    back_rows = []
    det_rows = []
    for k in range(n_obj):
        i1 = idxb_ref[b, k]              # composed backbone index I1[I2[k]] (precomputed in wrapper)
        i2 = i2_ref[b, k]                # nms index into proposals
        back_rows.append(fm_ref[0, pl.ds(i1, 1), :])
        det_rows.append(fp_ref[0, pl.ds(i2, 1), :])
    geo_back = jnp.concatenate(back_rows, axis=0)                     # (K, Cb)
    geo_det = jnp.concatenate(det_rows, axis=0)                       # (K, Cd)
    geom_ref[0] = jnp.concatenate([geo_back, geo_det], axis=-1)       # ONE (K, Cb+Cd) store

    # ---- 2. positional encoding for the K+1 box rows (freq/off are resident constants) ----
    pe = jnp.sin(xrep_ref[0] * freq_ref[...] + off_ref[...])          # (K+1, F), single EUP sin
    pe_ref[0] = pe[0:n_obj, :]                                        # spatial_emb rows
    g_pe = pe[n_obj:n_obj + 1, :]                                     # (1, F) scene-box PE

    # ---- 3. global geometry: relu(Linear(concat([mean(fm), g_pe]))) as split matmul ----
    gmean = jnp.mean(fm_ref[0], axis=0, keepdims=True)                # (1, Cb)
    y = (jnp.dot(gmean, w_ref[0:c_back, :], preferred_element_type=jnp.float32)
         + jnp.dot(g_pe, w_ref[c_back:, :], preferred_element_type=jnp.float32)
         + bias_ref[...])
    glob_ref[0] = jnp.maximum(y, 0.0)


# ------------------------------ forward (wrapper) ------------------------------

def geometry_encoder_forward(fm, fp, I1, I2, boxes, scene_range, w, bias, d_model):
    """Post-backbone/detector GeometryEncoder.forward (single fused Pallas kernel)."""
    B, M, Cb = fm.shape
    _, P, Cd = fp.shape
    K = I2.shape[1]
    F = 12 * d_model
    Cin = w.shape[0]
    assert Cin == Cb + F

    I1 = I1.astype(jnp.int32)
    I2 = I2.astype(jnp.int32)
    # composed gather index (tiny BxK int op) -> removes the dependent SMEM scalar chain
    idx_back = jnp.take_along_axis(I1, I2, axis=1)                               # (B, K)

    # Tiny 12-lane box bookkeeping stays as one fused XLA elementwise op; all heavy data
    # (fm, fp, weights) is only touched inside the Pallas kernel.
    sr = scene_range.reshape(B, 1, 3).astype(jnp.float32)
    centers = boxes[..., :3] / sr
    sizes = boxes[..., 3:] / sr
    box_vec = jnp.concatenate(
        [centers, sizes, centers - sizes / 2, centers + sizes / 2], axis=-1)      # (B, K, 12)

    # NOTE: the PyTorch code builds g_box per object then squeeze(1)+cat — the intended
    # semantics is one scene-level box per batch; we append that single row as row K and
    # run PE on everything at once inside the kernel.
    scene_min = jnp.zeros((B, 1, 3), jnp.float32)
    scene_max = jnp.broadcast_to(sr, (B, 1, 3))
    g_box = jnp.concatenate([(scene_max + scene_min) / 2 / sr,
                             (scene_max - scene_min) / sr,
                             scene_min, scene_max / sr], axis=-1)                 # (B, 1, 12)
    box_all = jnp.concatenate([box_vec, g_box], axis=1).astype(jnp.float32)       # (B, K+1, 12)

    # d_model-fold lane expansion done ONCE here on the tiny box tensor (perf-review item):
    # x_rep[b, r, j] = box_all[b, r, j // d_model]
    x_rep = jnp.repeat(box_all, d_model, axis=-1)                                 # (B, K+1, F)

    # per-lane frequency and sin/cos phase-offset tables (host-side compile-time constants)
    j = np.arange(F) % d_model
    freq_np = np.exp(-(2.0 * (j // 2)) * (math.log(10000.0) / d_model)).astype(np.float32)
    off_np = ((j % 2) * (math.pi / 2.0)).astype(np.float32)
    freq = jnp.asarray(freq_np).reshape(1, F)
    off = jnp.asarray(off_np).reshape(1, F)

    kernel = functools.partial(_fused_geometry_kernel, n_obj=K, c_back=Cb)

    cost = pl.CostEstimate(
        flops=int(B * (2 * Cin * Cb + 2 * (K + 1) * F + M * Cb)),
        transcendentals=int(B * (K + 1) * F),
        bytes_accessed=int(4 * (fm.size + fp.size + x_rep.size + w.size
                                + B * K * (Cb + Cd) + B * K * F + B * Cb)),
    )

    # Per-batch fm block is ~M*Cb*4 bytes (1.2 MB even at GroupFree sizes M=1024, C=288),
    # so no M-tiling / accumulator is needed; weights & PE tables are grid-resident
    # (index_map -> (0, 0)).  Everything fits far under the default scoped-VMEM limit
    # on all of v5e / v6e / v7x.
    geom_feats, spatial_emb, global_geom = pl.pallas_call(
        kernel,
        out_shape=(jax.ShapeDtypeStruct((B, K, Cb + Cd), jnp.float32),
                   jax.ShapeDtypeStruct((B, K, F), jnp.float32),
                   jax.ShapeDtypeStruct((B, 1, Cb), jnp.float32)),
        grid_spec=pltpu.PrefetchScalarGridSpec(
            num_scalar_prefetch=2,                 # idx_back, I2 -> SMEM, drive in-kernel gathers
            grid=(B,),
            in_specs=[
                pl.BlockSpec((1, M, Cb), lambda b, idxb, i2: (b, 0, 0)),     # fm (read once)
                pl.BlockSpec((1, P, Cd), lambda b, idxb, i2: (b, 0, 0)),     # fp
                pl.BlockSpec((1, K + 1, F), lambda b, idxb, i2: (b, 0, 0)),  # expanded boxes
                pl.BlockSpec((1, F), lambda b, idxb, i2: (0, 0)),            # freq (resident)
                pl.BlockSpec((1, F), lambda b, idxb, i2: (0, 0)),            # off  (resident)
                pl.BlockSpec((Cin, Cb), lambda b, idxb, i2: (0, 0)),         # FFN weight (resident)
                pl.BlockSpec((1, Cb), lambda b, idxb, i2: (0, 0)),           # FFN bias (resident)
            ],
            out_specs=(
                pl.BlockSpec((1, K, Cb + Cd), lambda b, idxb, i2: (b, 0, 0)),
                pl.BlockSpec((1, K, F), lambda b, idxb, i2: (b, 0, 0)),
                pl.BlockSpec((1, 1, Cb), lambda b, idxb, i2: (b, 0, 0)),
            ),
        ),
        compiler_params=pltpu.CompilerParams(
            dimension_semantics=("parallel",)),    # batch axis shards across v7x's 2 TCs
        cost_estimate=cost,
    )(idx_back, I2,
      fm.astype(jnp.float32), fp.astype(jnp.float32), x_rep, freq, off,
      w.astype(jnp.float32), bias.reshape(1, Cb).astype(jnp.float32))

    return geom_feats, spatial_emb, global_geom.reshape(B, Cb)


# ------------------------------ pure-JAX reference ------------------------------

def _ref_pe(x, d_model):
    freq = jnp.exp(-jnp.arange(0, d_model, 2, dtype=jnp.float32)
                   * (math.log(10000.0) / d_model))
    ph = x[..., None] * freq
    st = jnp.stack([jnp.sin(ph), jnp.cos(ph)], axis=-1)
    return st.reshape(x.shape[:-1] + (x.shape[-1] * d_model,))


def _ref_forward(fm, fp, I1, I2, boxes, scene_range, w, b, d_model):
    B, M, Cb = fm.shape
    bidx = jnp.arange(B)[:, None]
    idx_back = jnp.take_along_axis(I1, I2, axis=1)
    geo_back = fm[bidx, idx_back]
    geo_ref = fp[bidx, I2]
    geom_feats = jnp.concatenate([geo_back, geo_ref], axis=-1)
    sr = scene_range.reshape(B, 1, 3)
    centers = boxes[..., :3] / sr
    sizes = boxes[..., 3:] / sr
    box_vec = jnp.concatenate(
        [centers, sizes, centers - sizes / 2, centers + sizes / 2], axis=-1)
    spatial_emb = _ref_pe(box_vec, d_model)
    scene_min = jnp.zeros((B, 1, 3), jnp.float32)
    scene_max = jnp.broadcast_to(sr, (B, 1, 3))
    g_box = jnp.concatenate([(scene_max + scene_min) / 2 / sr,
                             (scene_max - scene_min) / sr,
                             scene_min, scene_max / sr], axis=-1)
    g_spatial = _ref_pe(g_box, d_model)[:, 0]
    global_back = fm.mean(axis=1)
    x = jnp.concatenate([global_back, g_spatial], axis=-1)
    global_geom = jnp.maximum(x @ w + b, 0.0)
    return geom_feats, spatial_emb, global_geom


# ------------------------------------ main ------------------------------------

if __name__ == "__main__":
    B, N, M, P, K = 2, 256, 64, 32, 8
    C_back, C_det, d_model = 128, 128, 32

    key = jax.random.PRNGKey(0)
    k = jax.random.split(key, 10)

    xyz = jax.random.normal(k[0], (B, N, 3), jnp.float32)       # module input (consumed by the stubbed backbone)
    scene_range = jax.random.uniform(k[1], (B, 3), jnp.float32, 2.0, 6.0)

    # TODO(synk): PointnetSAModuleMSG backbone and pretrained GroupFreeDetector are
    # external checkpoint-loaded nets (no definitions given); their outputs are
    # synthesized deterministically here.
    fm = jax.random.normal(k[2], (B, M, C_back), jnp.float32)         # backbone point feats FM
    FP = jax.random.normal(k[3], (B, P, C_det), jnp.float32)          # detector proposal feats
    I1 = jax.random.randint(k[4], (B, P), 0, M, jnp.int32)            # init_proposal_indices
    I2 = jax.random.randint(k[5], (B, K), 0, P, jnp.int32)            # nms_indices (top K)
    boxes = jnp.concatenate(
        [jax.random.uniform(k[6], (B, K, 3), jnp.float32, 0.0, 4.0),  # centers
         jax.random.uniform(k[7], (B, K, 3), jnp.float32, 0.2, 1.5)], # sizes
        axis=-1)

    # global_ffn = Linear(C_back + 12*d_model -> C_back) + ReLU, deterministic init
    global_in = C_back + 12 * d_model
    W = jax.random.normal(k[8], (global_in, C_back), jnp.float32) * 0.02
    bvec = (jax.random.normal(k[9], (C_back,), jnp.float32) * 0.02).reshape(1, C_back)

    out = geometry_encoder_forward(fm, FP, I1, I2, boxes, scene_range, W, bvec, d_model)
    geom_feats, spatial_emb, global_geom = jax.block_until_ready(out)

    ref = _ref_forward(fm, FP, I1, I2, boxes, scene_range, W, bvec, d_model)
    assert geom_feats.shape == (B, K, C_back + C_det)
    assert spatial_emb.shape == (B, K, 12 * d_model)
    assert global_geom.shape == (B, C_back)
    np.testing.assert_allclose(np.asarray(geom_feats), np.asarray(ref[0]), rtol=1e-4, atol=1e-4)
    np.testing.assert_allclose(np.asarray(spatial_emb), np.asarray(ref[1]), rtol=1e-4, atol=1e-4)
    np.testing.assert_allclose(np.asarray(global_geom), np.asarray(ref[2]), rtol=1e-4, atol=1e-4)

    print("KERNEL_OK")
</pallas_src>

<mosaic_0001>
module attributes {stable_mosaic.version = 11 : i64} {
  func.func @_fused_geometry_kernel(%arg0: i32, %arg1: memref<2x8xi32, #tpu.memory_space<smem>>, %arg2: memref<2x8xi32, #tpu.memory_space<smem>>, %arg3: memref<1x64x128xf32, #tpu.memory_space<vmem>>, %arg4: memref<1x32x128xf32, #tpu.memory_space<vmem>>, %arg5: memref<1x9x384xf32, #tpu.memory_space<vmem>>, %arg6: memref<1x384xf32, #tpu.memory_space<vmem>>, %arg7: memref<1x384xf32, #tpu.memory_space<vmem>>, %arg8: memref<512x128xf32, #tpu.memory_space<vmem>>, %arg9: memref<1x128xf32, #tpu.memory_space<vmem>>, %arg10: memref<1x8x256xf32, #tpu.memory_space<vmem>>, %arg11: memref<1x8x384xf32, #tpu.memory_space<vmem>>, %arg12: memref<1x1x128xf32, #tpu.memory_space<vmem>>) attributes {dimension_semantics = [#tpu.dimension_semantics<parallel>], iteration_bounds = array<i64: 2>, scalar_prefetch = 2 : i64, scratch_operands = 0 : i64, tpu.core_type = #tpu.core_type<tc>, window_params = [{transform_indices = @transform_0, window_bounds = array<i64: 1, 64, 128>}, {transform_indices = @transform_1, window_bounds = array<i64: 1, 32, 128>}, {transform_indices = @transform_2, window_bounds = array<i64: 1, 9, 384>}, {pipeline_mode = #tpu.pipeline_mode<synchronous>, transform_indices = @transform_3, window_bounds = array<i64: 1, 384>}, {pipeline_mode = #tpu.pipeline_mode<synchronous>, transform_indices = @transform_4, window_bounds = array<i64: 1, 384>}, {pipeline_mode = #tpu.pipeline_mode<synchronous>, transform_indices = @transform_5, window_bounds = array<i64: 512, 128>}, {pipeline_mode = #tpu.pipeline_mode<synchronous>, transform_indices = @transform_6, window_bounds = array<i64: 1, 128>}, {transform_indices = @transform_7, window_bounds = array<i64: 1, 8, 256>}, {transform_indices = @transform_8, window_bounds = array<i64: 1, 8, 384>}, {transform_indices = @transform_9, window_bounds = array<i64: 1, 1, 128>}]} {
    %0 = arith.index_cast %arg0 : i32 to index
    %c0 = arith.constant 0 : index
    %1 = memref.load %arg1[%0, %c0] : memref<2x8xi32, #tpu.memory_space<smem>>
    %2 = arith.index_cast %arg0 : i32 to index
    %c0_0 = arith.constant 0 : index
    %3 = memref.load %arg2[%2, %c0_0] : memref<2x8xi32, #tpu.memory_space<smem>>
    %c0_1 = arith.constant 0 : index
    %4 = arith.index_cast %1 : i32 to index
    %c0_2 = arith.constant 0 : index
    %5 = vector.load %arg3[%c0_1, %4, %c0_2] : memref<1x64x128xf32, #tpu.memory_space<vmem>>, vector<1x1x128xf32>
    %6 = vector.shape_cast %5 : vector<1x1x128xf32> to vector<1x128xf32>
    %c0_3 = arith.constant 0 : index
    %7 = arith.index_cast %3 : i32 to index
    %c0_4 = arith.constant 0 : index
    %8 = vector.load %arg4[%c0_3, %7, %c0_4] : memref<1x32x128xf32, #tpu.memory_space<vmem>>, vector<1x1x128xf32>
    %9 = vector.shape_cast %8 : vector<1x1x128xf32> to vector<1x128xf32>
    %10 = arith.index_cast %arg0 : i32 to index
    %c1 = arith.constant 1 : index
    %11 = memref.load %arg1[%10, %c1] : memref<2x8xi32, #tpu.memory_space<smem>>
    %12 = arith.index_cast %arg0 : i32 to index
    %c1_5 = arith.constant 1 : index
    %13 = memref.load %arg2[%12, %c1_5] : memref<2x8xi32, #tpu.memory_space<smem>>
    %c0_6 = arith.constant 0 : index
    %14 = arith.index_cast %11 : i32 to index
    %c0_7 = arith.constant 0 : index
    %15 = vector.load %arg3[%c0_6, %14, %c0_7] : memref<1x64x128xf32, #tpu.memory_space<vmem>>, vector<1x1x128xf32>
    %16 = vector.shape_cast %15 : vector<1x1x128xf32> to vector<1x128xf32>
    %c0_8 = arith.constant 0 : index
    %17 = arith.index_cast %13 : i32 to index
    %c0_9 = arith.constant 0 : index
    %18 = vector.load %arg4[%c0_8, %17, %c0_9] : memref<1x32x128xf32, #tpu.memory_space<vmem>>, vector<1x1x128xf32>
    %19 = vector.shape_cast %18 : vector<1x1x128xf32> to vector<1x128xf32>
    %20 = arith.index_cast %arg0 : i32 to index
    %c2 = arith.constant 2 : index
    %21 = memref.load %arg1[%20, %c2] : memref<2x8xi32, #tpu.memory_space<smem>>
    %22 = arith.index_cast %arg0 : i32 to index
    %c2_10 = arith.constant 2 : index
    %23 = memref.load %arg2[%22, %c2_10] : memref<2x8xi32, #tpu.memory_space<smem>>
    %c0_11 = arith.constant 0 : index
    %24 = arith.index_cast %21 : i32 to index
    %c0_12 = arith.constant 0 : index
    %25 = vector.load %arg3[%c0_11, %24, %c0_12] : memref<1x64x128xf32, #tpu.memory_space<vmem>>, vector<1x1x128xf32>
    %26 = vector.shape_cast %25 : vector<1x1x128xf32> to vector<1x128xf32>
    %c0_13 = arith.constant 0 : index
    %27 = arith.index_cast %23 : i32 to index
    %c0_14 = arith.constant 0 : index
    %28 = vector.load %arg4[%c0_13, %27, %c0_14] : memref<1x32x128xf32, #tpu.memory_space<vmem>>, vector<1x1x128xf32>
    %29 = vector.shape_cast %28 : vector<1x1x128xf32> to vector<1x128xf32>
    %30 = arith.index_cast %arg0 : i32 to index
    %c3 = arith.constant 3 : index
    %31 = memref.load %arg1[%30, %c3] : memref<2x8xi32, #tpu.memory_space<smem>>
    %32 = arith.index_cast %arg0 : i32 to index
    %c3_15 = arith.constant 3 : index
    %33 = memref.load %arg2[%32, %c3_15] : memref<2x8xi32, #tpu.memory_space<smem>>
    %c0_16 = arith.constant 0 : index
    %34 = arith.index_cast %31 : i32 to index
    %c0_17 = arith.constant 0 : index
    %35 = vector.load %arg3[%c0_16, %34, %c0_17] : memref<1x64x128xf32, #tpu.memory_space<vmem>>, vector<1x1x128xf32>
    %36 = vector.shape_cast %35 : vector<1x1x128xf32> to vector<1x128xf32>
    %c0_18 = arith.constant 0 : index
    %37 = arith.index_cast %33 : i32 to index
    %c0_19 = arith.constant 0 : index
    %38 = vector.load %arg4[%c0_18, %37, %c0_19] : memref<1x32x128xf32, #tpu.memory_space<vmem>>, vector<1x1x128xf32>
    %39 = vector.shape_cast %38 : vector<1x1x128xf32> to vector<1x128xf32>
    %40 = arith.index_cast %arg0 : i32 to index
    %c4 = arith.constant 4 : index
    %41 = memref.load %arg1[%40, %c4] : memref<2x8xi32, #tpu.memory_space<smem>>
    %42 = arith.index_cast %arg0 : i32 to index
    %c4_20 = arith.constant 4 : index
    %43 = memref.load %arg2[%42, %c4_20] : memref<2x8xi32, #tpu.memory_space<smem>>
    %c0_21 = arith.constant 0 : index
    %44 = arith.index_cast %41 : i32 to index
    %c0_22 = arith.constant 0 : index
    %45 = vector.load %arg3[%c0_21, %44, %c0_22] : memref<1x64x128xf32, #tpu.memory_space<vmem>>, vector<1x1x128xf32>
    %46 = vector.shape_cast %45 : vector<1x1x128xf32> to vector<1x128xf32>
    %c0_23 = arith.constant 0 : index
    %47 = arith.index_cast %43 : i32 to index
    %c0_24 = arith.constant 0 : index
    %48 = vector.load %arg4[%c0_23, %47, %c0_24] : memref<1x32x128xf32, #tpu.memory_space<vmem>>, vector<1x1x128xf32>
    %49 = vector.shape_cast %48 : vector<1x1x128xf32> to vector<1x128xf32>
    %50 = arith.index_cast %arg0 : i32 to index
    %c5 = arith.constant 5 : index
    %51 = memref.load %arg1[%50, %c5] : memref<2x8xi32, #tpu.memory_space<smem>>
    %52 = arith.index_cast %arg0 : i32 to index
    %c5_25 = arith.constant 5 : index
    %53 = memref.load %arg2[%52, %c5_25] : memref<2x8xi32, #tpu.memory_space<smem>>
    %c0_26 = arith.constant 0 : index
    %54 = arith.index_cast %51 : i32 to index
    %c0_27 = arith.constant 0 : index
    %55 = vector.load %arg3[%c0_26, %54, %c0_27] : memref<1x64x128xf32, #tpu.memory_space<vmem>>, vector<1x1x128xf32>
    %56 = vector.shape_cast %55 : vector<1x1x128xf32> to vector<1x128xf32>
    %c0_28 = arith.constant 0 : index
    %57 = arith.index_cast %53 : i32 to index
    %c0_29 = arith.constant 0 : index
    %58 = vector.load %arg4[%c0_28, %57, %c0_29] : memref<1x32x128xf32, #tpu.memory_space<vmem>>, vector<1x1x128xf32>
    %59 = vector.shape_cast %58 : vector<1x1x128xf32> to vector<1x128xf32>
    %60 = arith.index_cast %arg0 : i32 to index
    %c6 = arith.constant 6 : index
    %61 = memref.load %arg1[%60, %c6] : memref<2x8xi32, #tpu.memory_space<smem>>
    %62 = arith.index_cast %arg0 : i32 to index
    %c6_30 = arith.constant 6 : index
    %63 = memref.load %arg2[%62, %c6_30] : memref<2x8xi32, #tpu.memory_space<smem>>
    %c0_31 = arith.constant 0 : index
    %64 = arith.index_cast %61 : i32 to index
    %c0_32 = arith.constant 0 : index
    %65 = vector.load %arg3[%c0_31, %64, %c0_32] : memref<1x64x128xf32, #tpu.memory_space<vmem>>, vector<1x1x128xf32>
    %66 = vector.shape_cast %65 : vector<1x1x128xf32> to vector<1x128xf32>
    %c0_33 = arith.constant 0 : index
    %67 = arith.index_cast %63 : i32 to index
    %c0_34 = arith.constant 0 : index
    %68 = vector.load %arg4[%c0_33, %67, %c0_34] : memref<1x32x128xf32, #tpu.memory_space<vmem>>, vector<1x1x128xf32>
    %69 = vector.shape_cast %68 : vector<1x1x128xf32> to vector<1x128xf32>
    %70 = arith.index_cast %arg0 : i32 to index
    %c7 = arith.constant 7 : index
    %71 = memref.load %arg1[%70, %c7] : memref<2x8xi32, #tpu.memory_space<smem>>
    %72 = arith.index_cast %arg0 : i32 to index
    %c7_35 = arith.constant 7 : index
    %73 = memref.load %arg2[%72, %c7_35] : memref<2x8xi32, #tpu.memory_space<smem>>
    %c0_36 = arith.constant 0 : index
    %74 = arith.index_cast %71 : i32 to index
    %c0_37 = arith.constant 0 : index
    %75 = vector.load %arg3[%c0_36, %74, %c0_37] : memref<1x64x128xf32, #tpu.memory_space<vmem>>, vector<1x1x128xf32>
    %76 = vector.shape_cast %75 : vector<1x1x128xf32> to vector<1x128xf32>
    %c0_38 = arith.constant 0 : index
    %77 = arith.index_cast %73 : i32 to index
    %c0_39 = arith.constant 0 : index
    %78 = vector.load %arg4[%c0_38, %77, %c0_39] : memref<1x32x128xf32, #tpu.memory_space<vmem>>, vector<1x1x128xf32>
    %79 = vector.shape_cast %78 : vector<1x1x128xf32> to vector<1x128xf32>
    %80 = tpu.concatenate %6, %16, %26, %36, %46, %56, %66, %76 in 0 : vector<1x128xf32>, vector<1x128xf32>, vector<1x128xf32>, vector<1x128xf32>, vector<1x128xf32>, vector<1x128xf32>, vector<1x128xf32>, vector<1x128xf32> -> vector<8x128xf32>
    %81 = tpu.concatenate %9, %19, %29, %39, %49, %59, %69, %79 in 0 : vector<1x128xf32>, vector<1x128xf32>, vector<1x128xf32>, vector<1x128xf32>, vector<1x128xf32>, vector<1x128xf32>, vector<1x128xf32>, vector<1x128xf32> -> vector<8x128xf32>
    %82 = tpu.concatenate %80, %81 in 1 : vector<8x128xf32>, vector<8x128xf32> -> vector<8x256xf32>
    %c0_40 = arith.constant 0 : index
    %c0_41 = arith.constant 0 : index
    %c0_42 = arith.constant 0 : index
    %83 = vector.load %arg10[%c0_40, %c0_41, %c0_42] : memref<1x8x256xf32, #tpu.memory_space<vmem>>, vector<1x8x256xf32>
    %84 = vector.shape_cast %83 : vector<1x8x256xf32> to vector<8x256xf32>
    %85 = vector.shape_cast %82 : vector<8x256xf32> to vector<1x8x256xf32>
    tpu.vector_store %arg10[%c0_40, %c0_41, %c0_42], %85 {strides = array<i32>} : memref<1x8x256xf32, #tpu.memory_space<vmem>>, vector<1x8x256xf32>,
    %c0_43 = arith.constant 0 : index
    %c0_44 = arith.constant 0 : index
    %c0_45 = arith.constant 0 : index
    %86 = vector.load %arg5[%c0_43, %c0_44, %c0_45] : memref<1x9x384xf32, #tpu.memory_space<vmem>>, vector<1x9x384xf32>
    %87 = vector.shape_cast %86 : vector<1x9x384xf32> to vector<9x384xf32>
    %c0_46 = arith.constant 0 : index
    %c0_47 = arith.constant 0 : index
    %88 = vector.load %arg6[%c0_46, %c0_47] : memref<1x384xf32, #tpu.memory_space<vmem>>, vector<1x384xf32>
    %89 = vector.broadcast %88 : vector<1x384xf32> to vector<9x384xf32>
    %90 = arith.mulf %87, %89 : vector<9x384xf32>
    %c0_48 = arith.constant 0 : index
    %c0_49 = arith.constant 0 : index
    %91 = vector.load %arg7[%c0_48, %c0_49] : memref<1x384xf32, #tpu.memory_space<vmem>>, vector<1x384xf32>
    %92 = vector.broadcast %91 : vector<1x384xf32> to vector<9x384xf32>
    %93 = arith.addf %90, %92 : vector<9x384xf32>
    %94 = math.sin %93 : vector<9x384xf32>
    %95 = vector.extract_strided_slice %94 {offsets = [0, 0], sizes = [8, 384], strides = [1, 1]} : vector<9x384xf32> to vector<8x384xf32>
    %c0_50 = arith.constant 0 : index
    %c0_51 = arith.constant 0 : index
    %c0_52 = arith.constant 0 : index
    %96 = vector.load %arg11[%c0_50, %c0_51, %c0_52] : memref<1x8x384xf32, #tpu.memory_space<vmem>>, vector<1x8x384xf32>
    %97 = vector.shape_cast %96 : vector<1x8x384xf32> to vector<8x384xf32>
    %98 = vector.shape_cast %95 : vector<8x384xf32> to vector<1x8x384xf32>
    tpu.vector_store %arg11[%c0_50, %c0_51, %c0_52], %98 {strides = array<i32>} : memref<1x8x384xf32, #tpu.memory_space<vmem>>, vector<1x8x384xf32>,
    %99 = vector.extract_strided_slice %94 {offsets = [8, 0], sizes = [1, 384], strides = [1, 1]} : vector<9x384xf32> to vector<1x384xf32>
    %c0_53 = arith.constant 0 : index
    %c0_54 = arith.constant 0 : index
    %c0_55 = arith.constant 0 : index
    %100 = vector.load %arg3[%c0_53, %c0_54, %c0_55] : memref<1x64x128xf32, #tpu.memory_space<vmem>>, vector<1x64x128xf32>
    %101 = vector.shape_cast %100 : vector<1x64x128xf32> to vector<64x128xf32>
    %cst = arith.constant dense<0.000000e+00> : vector<128xf32>
    %102 = vector.multi_reduction <add>, %101, %cst [0] : vector<64x128xf32> to vector<128xf32>
    %103 = vector.shape_cast %102 : vector<128xf32> to vector<1x128xf32>
    %cst_56 = arith.constant 6.400000e+01 : f32
    %104 = vector.broadcast %cst_56 : f32 to vector<1x128xf32>
    %105 = arith.divf %103, %104 : vector<1x128xf32>
    %c0_57 = arith.constant 0 : index
    %c0_58 = arith.constant 0 : index
    %106 = vector.load %arg8[%c0_57, %c0_58] : memref<512x128xf32, #tpu.memory_space<vmem>>, vector<128x128xf32>
    %cst_59 = arith.constant dense<0.000000e+00> : vector<1x128xf32>
    %107 = tpu.matmul %105, %106, %cst_59 {dimension_numbers = #tpu.dot_dimension_numbers<[1], [0], [0], [1], [0, 0, 1, 1], [], []>} : vector<1x128xf32>, vector<128x128xf32>, vector<1x128xf32> -> vector<1x128xf32>
    %c128 = arith.constant 128 : index
    %c0_60 = arith.constant 0 : index
    %108 = vector.load %arg8[%c128, %c0_60] : memref<512x128xf32, #tpu.memory_space<vmem>>, vector<384x128xf32>
    %cst_61 = arith.constant dense<0.000000e+00> : vector<1x128xf32>
    %109 = tpu.matmul %99, %108, %cst_61 {dimension_numbers = #tpu.dot_dimension_numbers<[1], [0], [0], [1], [0, 0, 1, 1], [], []>} : vector<1x384xf32>, vector<384x128xf32>, vector<1x128xf32> -> vector<1x128xf32>
    %110 = arith.addf %107, %109 : vector<1x128xf32>
    %c0_62 = arith.constant 0 : index
    %c0_63 = arith.constant 0 : index
    %111 = vector.load %arg9[%c0_62, %c0_63] : memref<1x128xf32, #tpu.memory_space<vmem>>, vector<1x128xf32>
    %112 = arith.addf %110, %111 : vector<1x128xf32>
    %cst_64 = arith.constant 0.000000e+00 : f32
    %113 = vector.broadcast %cst_64 : f32 to vector<1x128xf32>
    %114 = arith.maximumf %112, %113 : vector<1x128xf32>
    %c0_65 = arith.constant 0 : index
    %c0_66 = arith.constant 0 : index
    %c0_67 = arith.constant 0 : index
    %115 = vector.load %arg12[%c0_65, %c0_66, %c0_67] : memref<1x1x128xf32, #tpu.memory_space<vmem>>, vector<1x1x128xf32>
    %116 = vector.shape_cast %115 : vector<1x1x128xf32> to vector<1x128xf32>
    %117 = vector.shape_cast %114 : vector<1x128xf32> to vector<1x1x128xf32>
    tpu.vector_store %arg12[%c0_65, %c0_66, %c0_67], %117 {strides = array<i32>} : memref<1x1x128xf32, #tpu.memory_space<vmem>>, vector<1x1x128xf32>,
    return
  }
  func.func @transform_0(%arg0: i32, %arg1: memref<2x8xi32, #tpu.memory_space<smem>>, %arg2: memref<2x8xi32, #tpu.memory_space<smem>>) -> (i32, i32, i32) {
    %c0_i32 = arith.constant 0 : i32
    %c0_i32_0 = arith.constant 0 : i32
    %c0_i32_1 = arith.constant 0 : i32
    return %arg0, %c0_i32, %c0_i32_0 : i32, i32, i32
  }
  func.func @transform_1(%arg0: i32, %arg1: memref<2x8xi32, #tpu.memory_space<smem>>, %arg2: memref<2x8xi32, #tpu.memory_space<smem>>) -> (i32, i32, i32) {
    %c0_i32 = arith.constant 0 : i32
    %c0_i32_0 = arith.constant 0 : i32
    %c0_i32_1 = arith.constant 0 : i32
    return %arg0, %c0_i32, %c0_i32_0 : i32, i32, i32
  }
  func.func @transform_2(%arg0: i32, %arg1: memref<2x8xi32, #tpu.memory_space<smem>>, %arg2: memref<2x8xi32, #tpu.memory_space<smem>>) -> (i32, i32, i32) {
    %c0_i32 = arith.constant 0 : i32
    %c0_i32_0 = arith.constant 0 : i32
    %c0_i32_1 = arith.constant 0 : i32
    return %arg0, %c0_i32, %c0_i32_0 : i32, i32, i32
  }
  func.func @transform_3(%arg0: i32, %arg1: memref<2x8xi32, #tpu.memory_space<smem>>, %arg2: memref<2x8xi32, #tpu.memory_space<smem>>) -> (i32, i32) {
    %c0_i32 = arith.constant 0 : i32
    %c0_i32_0 = arith.constant 0 : i32
    %c0_i32_1 = arith.constant 0 : i32
    return %c0_i32, %c0_i32_0 : i32, i32
  }
  func.func @transform_4(%arg0: i32, %arg1: memref<2x8xi32, #tpu.memory_space<smem>>, %arg2: memref<2x8xi32, #tpu.memory_space<smem>>) -> (i32, i32) {
    %c0_i32 = arith.constant 0 : i32
    %c0_i32_0 = arith.constant 0 : i32
    %c0_i32_1 = arith.constant 0 : i32
    return %c0_i32, %c0_i32_0 : i32, i32
  }
  func.func @transform_5(%arg0: i32, %arg1: memref<2x8xi32, #tpu.memory_space<smem>>, %arg2: memref<2x8xi32, #tpu.memory_space<smem>>) -> (i32, i32) {
    %c0_i32 = arith.constant 0 : i32
    %c0_i32_0 = arith.constant 0 : i32
    %c0_i32_1 = arith.constant 0 : i32
    return %c0_i32, %c0_i32_0 : i32, i32
  }
  func.func @transform_6(%arg0: i32, %arg1: memref<2x8xi32, #tpu.memory_space<smem>>, %arg2: memref<2x8xi32, #tpu.memory_space<smem>>) -> (i32, i32) {
    %c0_i32 = arith.constant 0 : i32
    %c0_i32_0 = arith.constant 0 : i32
    %c0_i32_1 = arith.constant 0 : i32
    return %c0_i32, %c0_i32_0 : i32, i32
  }
  func.func @transform_7(%arg0: i32, %arg1: memref<2x8xi32, #tpu.memory_space<smem>>, %arg2: memref<2x8xi32, #tpu.memory_space<smem>>) -> (i32, i32, i32) {
    %c0_i32 = arith.constant 0 : i32
    %c0_i32_0 = arith.constant 0 : i32
    %c0_i32_1 = arith.constant 0 : i32
    return %arg0, %c0_i32, %c0_i32_0 : i32, i32, i32
  }
  func.func @transform_8(%arg0: i32, %arg1: memref<2x8xi32, #tpu.memory_space<smem>>, %arg2: memref<2x8xi32, #tpu.memory_space<smem>>) -> (i32, i32, i32) {
    %c0_i32 = arith.constant 0 : i32
    %c0_i32_0 = arith.constant 0 : i32
    %c0_i32_1 = arith.constant 0 : i32
    return %arg0, %c0_i32, %c0_i32_0 : i32, i32, i32
  }
  func.func @transform_9(%arg0: i32, %arg1: memref<2x8xi32, #tpu.memory_space<smem>>, %arg2: memref<2x8xi32, #tpu.memory_space<smem>>) -> (i32, i32, i32) {
    %c0_i32 = arith.constant 0 : i32
    %c0_i32_0 = arith.constant 0 : i32
    %c0_i32_1 = arith.constant 0 : i32
    return %arg0, %c0_i32, %c0_i32_0 : i32, i32, i32
  }
}

</mosaic_0001>

<llo_original>
// kernel: tpu_custom_call.1
$region0: #{tpu_custom_call.1}
  #allocation0 [shape = 'u32[]', space=smem, size = 0x4, offset = 0x4, fixed_abs, tag = 'smem constant byte address 0x4 - core index']
  #allocation1 [shape = 'u32[72,128]{1,0:T(1,128)}', space=vmem, size = 0x9000, scoped, tag = 'internal scratch']
  #allocation2 [shape = 's32[1]{0}', space=sflag, size = 0x4, scoped, tag = 'scoped memory for tpu_custom_call.1']
  #allocation3 [shape = 'u8[1024]{0}', space=smem, size = 0x400, scoped, tag = 'prefetched SMEM operand 0']
  #allocation4 [shape = 'u8[1024]{0}', space=smem, size = 0x400, scoped, tag = 'prefetched SMEM operand 1']
  %s0 = inlined_call_operand.vmem [shape: s32[2,8], index: 0, kind: input, shape index: {}]
  %s1 = inlined_call_operand.vmem [shape: s32[2,8], index: 1, kind: input, shape index: {}]
  %s2 = inlined_call_operand.vmem [shape: f32[2,64,128], index: 2, kind: input, shape index: {}]
  %s3 = inlined_call_operand.hbm [shape: f32[2,32,128], index: 3, kind: input, shape index: {}]
  %s4 = inlined_call_operand.vmem [shape: f32[2,9,384], index: 4, kind: input, shape index: {}]
  %s5 = inlined_call_operand.vmem [shape: f32[1,384], index: 5, kind: input, shape index: {}]
  %s6 = inlined_call_operand.vmem [shape: f32[1,384], index: 6, kind: input, shape index: {}]
  %s7 = inlined_call_operand.hbm [shape: f32[512,128], index: 7, kind: input, shape index: {}]
  %s8 = inlined_call_operand.vmem [shape: f32[1,128], index: 8, kind: input, shape index: {}]
  %s9 = inlined_call_operand.hbm [shape: f32[2,8,256], index: 9, kind: output, shape index: {0}]
  %s10 = inlined_call_operand.hbm [shape: f32[2,8,384], index: 10, kind: output, shape index: {1}]
  %s11 = inlined_call_operand.hbm [shape: f32[2,1,128], index: 11, kind: output, shape index: {2}]
  %12 = xla_tuple %s9, %s10, %s11
  %s13 = sld [smem:[#allocation0]]
  $region85: #{tpu_custom_call.1} parent=0
    _
  %s15 = ssub.s32 1, %s13
  %s16 = scalar_select 0, %s15, %s13
  %s18 = sshll.u32 %s0, 4
  %s19 = int_to_ptr.vmem [resolvable:$true] %s18
  %21 = dma.vmem_to_smem %s19, 32, [#allocation3], [#allocation2]
  %s23 = sshll.u32 %s1, 4
  %s24 = int_to_ptr.vmem [resolvable:$true] %s23
  %26 = dma.vmem_to_smem %s24, 32, [#allocation4], [#allocation2]
  %28 = dma.done [#allocation2], 64
  %29 = sfence
  $region1: #{tpu_custom_call.1} parent=0
    #allocation5 [shape = 'u8[32768]{0}', space=vmem, size = 0x8000, scoped, tag = 'input window, operand 3']
    #allocation6 [shape = 's32[2]{0}', space=sflag, size = 0x8, scoped, tag = 'scoped memory for tpu_custom_call.1']
    #allocation7 [shape = 's32[2]{0}', space=sflag, size = 0x8, scoped, tag = 'scoped memory for tpu_custom_call.1']
    #allocation8 [shape = 'u8[262144]{0}', space=vmem, size = 0x40000, scoped, tag = 'input window, operand 7, single buffered']
    #allocation9 [shape = 's32[1]{0}', space=sflag, size = 0x4, scoped, tag = 'scoped memory for tpu_custom_call.1']
    #allocation10 [shape = 'u8[16384]{0}', space=vmem, size = 0x4000, scoped, tag = 'output window, operand 0']
    #allocation11 [shape = 'u8[24576]{0}', space=vmem, size = 0x6000, scoped, tag = 'output window, operand 1']
    #allocation12 [shape = 's32[2]{0}', space=sflag, size = 0x8, scoped, tag = 'scoped memory for tpu_custom_call.1']
    #allocation13 [shape = 'u8[1024]{0}', space=vmem, size = 0x400, scoped, tag = 'output window, operand 2']
    %30 = vsyncpa [#allocation6], 0
    %s31 = scalar_lea.sflag [#allocation6], 1
    %32 = vsyncpa %s31, 0
    %33 = vsyncpa [#allocation9], 0
    %34 = vsyncpa [#allocation7], 0
    %s35 = scalar_lea.sflag [#allocation7], 1
    %36 = vsyncpa %s35, 0
    %37 = vsyncpa [#allocation12], 0
    %s38 = scalar_lea.sflag [#allocation12], 1
    %39 = vsyncpa %s38, 0
    loop: start=0, step=1, limit=4
    $region2: #{tpu_custom_call.1} parent=1 // loop_pre_header
      _
    $region3: #{tpu_custom_call.1} parent=1 // loop_header
      %s41 = sphi 0, %s45
      %p42 = scmp.ge.s32.totalorder %s41, 4
      %s51 = sphi 0, %s53
      %s54 = sphi 0, %s51
      %s55 = sphi 0, %s54
      %s71 = sphi 0, %s55
      %s77 = sphi 0, %s79
      %s80 = sphi 0, %s77
      %s81 = sphi 0, %s80
      %s97 = sphi 0, %s81
      %s103 = sphi 0, %s105
      %s106 = sphi 0, %s103
      %s107 = sphi 0, %s106
      %s123 = sphi 0, %s107
      %s127 = sphi 0, %s127
      %s129 = sphi 0, %s127
      %s130 = sphi 0, %s129
      %s144 = sphi 0, %s130
      %s148 = sphi 0, %s148
      %s150 = sphi 0, %s148
      %s151 = sphi 0, %s150
      %s165 = sphi 0, %s151
      %s169 = sphi 0, %s169
      %s171 = sphi 0, %s169
      %s172 = sphi 0, %s171
      %s186 = sphi 0, %s172
      %s190 = sphi 0, %s190
      %s192 = sphi 0, %s190
      %s193 = sphi 0, %s192
      %s207 = sphi 0, %s193
      %s213 = sphi 0, %s215
      %s216 = sphi 0, %s213
      %s217 = sphi 0, %s216
      %s233 = sphi 0, %s217
      %s239 = sphi 0, %s241
      %s242 = sphi 0, %s239
      %s243 = sphi 0, %s242
      %s259 = sphi 0, %s243
      %s265 = sphi 0, %s267
      %s268 = sphi 0, %s265
      %s269 = sphi 0, %s268
      %s285 = sphi 0, %s269
    $region4: #{tpu_custom_call.1} parent=1 // loop_header_branch
      %44 = sbr.rel (%p42) target = $region8
    $region5: #{tpu_custom_call.1} parent=1 // loop_body
      %s46 = ssub.s32 %s41, 1
      %s47 = ssub.s32 %s41, 2
      %s48 = sadd.s32 %s41, 1
      %s49 = ssub.s32 %s41, %s48
      %p50 = scmp.eq.s32.totalorder %s49, 0
      %s52 = sadd.s32 %s51, 1
      %s53 = scalar_select %p50, %s51, %s52
      %p56 = pneg %p50
      %p57 = scmp.eq.s32.totalorder %s41, 1
      %p58 = por %p56, %p57
      %p59 = scmp.ne.s32.totalorder %s51, %s54
      %p60 = scmp.eq.s32.totalorder %s41, 0
      %p61 = por %p59, %p60
      %p62 = scmp.ne.s32.totalorder %s51, %s54
      %p63 = scmp.eq.s32.totalorder %s46, 1
      %p64 = por %p62, %p63
      %p65 = scmp.ne.s32.totalorder %s54, %s55
      %p66 = scmp.eq.s32.totalorder %s46, 0
      %p67 = por %p65, %p66
      %p68 = scmp.ne.s32.totalorder %s54, %s55
      %p69 = scmp.eq.s32.totalorder %s47, 1
      %p70 = por %p68, %p69
      %p72 = scmp.ne.s32.totalorder %s55, %s71
      %p73 = scmp.eq.s32.totalorder %s47, 0
      %p74 = por %p72, %p73
      %s75 = ssub.s32 %s41, %s48
      %p76 = scmp.eq.s32.totalorder %s75, 0
      %s78 = sadd.s32 %s77, 1
      %s79 = scalar_select %p76, %s77, %s78
      %p82 = pneg %p76
      %p83 = scmp.eq.s32.totalorder %s41, 1
      %p84 = por %p82, %p83
      %p85 = scmp.ne.s32.totalorder %s77, %s80
      %p86 = scmp.eq.s32.totalorder %s41, 0
      %p87 = por %p85, %p86
      %p88 = scmp.ne.s32.totalorder %s77, %s80
      %p89 = scmp.eq.s32.totalorder %s46, 1
      %p90 = por %p88, %p89
      %p91 = scmp.ne.s32.totalorder %s80, %s81
      %p92 = scmp.eq.s32.totalorder %s46, 0
      %p93 = por %p91, %p92
      %p94 = scmp.ne.s32.totalorder %s80, %s81
      %p95 = scmp.eq.s32.totalorder %s47, 1
      %p96 = por %p94, %p95
      %p98 = scmp.ne.s32.totalorder %s81, %s97
      %p99 = scmp.eq.s32.totalorder %s47, 0
      %p100 = por %p98, %p99
      %s101 = ssub.s32 %s41, %s48
      %p102 = scmp.eq.s32.totalorder %s101, 0
      %s104 = sadd.s32 %s103, 1
      %s105 = scalar_select %p102, %s103, %s104
      %p108 = pneg %p102
      %p109 = scmp.eq.s32.totalorder %s41, 1
      %p110 = por %p108, %p109
      %p111 = scmp.ne.s32.totalorder %s103, %s106
      %p112 = scmp.eq.s32.totalorder %s41, 0
      %p113 = por %p111, %p112
      %p114 = scmp.ne.s32.totalorder %s103, %s106
      %p115 = scmp.eq.s32.totalorder %s46, 1
      %p116 = por %p114, %p115
      %p117 = scmp.ne.s32.totalorder %s106, %s107
      %p118 = scmp.eq.s32.totalorder %s46, 0
      %p119 = por %p117, %p118
      %p120 = scmp.ne.s32.totalorder %s106, %s107
      %p121 = scmp.eq.s32.totalorder %s47, 1
      %p122 = por %p120, %p121
      %p124 = scmp.ne.s32.totalorder %s107, %s123
      %p125 = scmp.eq.s32.totalorder %s47, 0
      %p126 = por %p124, %p125
      %s128 = sadd.s32 %s127, 1
      %p131 = scmp.eq.s32.totalorder %s41, 1
      %p132 = scmp.ne.s32.totalorder %s127, %s129
      %p133 = scmp.eq.s32.totalorder %s41, 0
      %p134 = por %p132, %p133
      %p135 = scmp.ne.s32.totalorder %s127, %s129
      %p136 = scmp.eq.s32.totalorder %s46, 1
      %p137 = por %p135, %p136
      %p138 = scmp.ne.s32.totalorder %s129, %s130
      %p139 = scmp.eq.s32.totalorder %s46, 0
      %p140 = por %p138, %p139
      %p141 = scmp.ne.s32.totalorder %s129, %s130
      %p142 = scmp.eq.s32.totalorder %s47, 1
      %p143 = por %p141, %p142
      %p145 = scmp.ne.s32.totalorder %s130, %s144
      %p146 = scmp.eq.s32.totalorder %s47, 0
      %p147 = por %p145, %p146
      %s149 = sadd.s32 %s148, 1
      %p152 = scmp.eq.s32.totalorder %s41, 1
      %p153 = scmp.ne.s32.totalorder %s148, %s150
      %p154 = scmp.eq.s32.totalorder %s41, 0
      %p155 = por %p153, %p154
      %p156 = scmp.ne.s32.totalorder %s148, %s150
      %p157 = scmp.eq.s32.totalorder %s46, 1
      %p158 = por %p156, %p157
      %p159 = scmp.ne.s32.totalorder %s150, %s151
      %p160 = scmp.eq.s32.totalorder %s46, 0
      %p161 = por %p159, %p160
      %p162 = scmp.ne.s32.totalorder %s150, %s151
      %p163 = scmp.eq.s32.totalorder %s47, 1
      %p164 = por %p162, %p163
      %p166 = scmp.ne.s32.totalorder %s151, %s165
      %p167 = scmp.eq.s32.totalorder %s47, 0
      %p168 = por %p166, %p167
      %s170 = sadd.s32 %s169, 1
      %p173 = scmp.eq.s32.totalorder %s41, 1
      %p174 = scmp.ne.s32.totalorder %s169, %s171
      %p175 = scmp.eq.s32.totalorder %s41, 0
      %p176 = por %p174, %p175
      %p177 = scmp.ne.s32.totalorder %s169, %s171
      %p178 = scmp.eq.s32.totalorder %s46, 1
      %p179 = por %p177, %p178
      %p180 = scmp.ne.s32.totalorder %s171, %s172
      %p181 = scmp.eq.s32.totalorder %s46, 0
      %p182 = por %p180, %p181
      %p183 = scmp.ne.s32.totalorder %s171, %s172
      %p184 = scmp.eq.s32.totalorder %s47, 1
      %p185 = por %p183, %p184
      %p187 = scmp.ne.s32.totalorder %s172, %s186
      %p188 = scmp.eq.s32.totalorder %s47, 0
      %p189 = por %p187, %p188
      %s191 = sadd.s32 %s190, 1
      %p194 = scmp.eq.s32.totalorder %s41, 1
      %p195 = scmp.ne.s32.totalorder %s190, %s192
      %p196 = scmp.eq.s32.totalorder %s41, 0
      %p197 = por %p195, %p196
      %p198 = scmp.ne.s32.totalorder %s190, %s192
      %p199 = scmp.eq.s32.totalorder %s46, 1
      %p200 = por %p198, %p199
      %p201 = scmp.ne.s32.totalorder %s192, %s193
      %p202 = scmp.eq.s32.totalorder %s46, 0
      %p203 = por %p201, %p202
      %p204 = scmp.ne.s32.totalorder %s192, %s193
      %p205 = scmp.eq.s32.totalorder %s47, 1
      %p206 = por %p204, %p205
      %p208 = scmp.ne.s32.totalorder %s193, %s207
      %p209 = scmp.eq.s32.totalorder %s47, 0
      %p210 = por %p208, %p209
      %s211 = ssub.s32 %s41, %s48
      %p212 = scmp.eq.s32.totalorder %s211, 0
      %s214 = sadd.s32 %s213, 1
      %s215 = scalar_select %p212, %s213, %s214
      %p218 = pneg %p212
      %p219 = scmp.eq.s32.totalorder %s41, 1
      %p220 = por %p218, %p219
      %p221 = scmp.ne.s32.totalorder %s213, %s216
      %p222 = scmp.eq.s32.totalorder %s41, 0
      %p223 = por %p221, %p222
      %p224 = scmp.ne.s32.totalorder %s213, %s216
      %p225 = scmp.eq.s32.totalorder %s46, 1
      %p226 = por %p224, %p225
      %p227 = scmp.ne.s32.totalorder %s216, %s217
      %p228 = scmp.eq.s32.totalorder %s46, 0
      %p229 = por %p227, %p228
      %p230 = scmp.ne.s32.totalorder %s216, %s217
      %p231 = scmp.eq.s32.totalorder %s47, 1
      %p232 = por %p230, %p231
      %p234 = scmp.ne.s32.totalorder %s217, %s233
      %p235 = scmp.eq.s32.totalorder %s47, 0
      %p236 = por %p234, %p235
      %s237 = ssub.s32 %s41, %s48
      %p238 = scmp.eq.s32.totalorder %s237, 0
      %s240 = sadd.s32 %s239, 1
      %s241 = scalar_select %p238, %s239, %s240
      %p244 = pneg %p238
      %p245 = scmp.eq.s32.totalorder %s41, 1
      %p246 = por %p244, %p245
      %p247 = scmp.ne.s32.totalorder %s239, %s242
      %p248 = scmp.eq.s32.totalorder %s41, 0
      %p249 = por %p247, %p248
      %p250 = scmp.ne.s32.totalorder %s239, %s242
      %p251 = scmp.eq.s32.totalorder %s46, 1
      %p252 = por %p250, %p251
      %p253 = scmp.ne.s32.totalorder %s242, %s243
      %p254 = scmp.eq.s32.totalorder %s46, 0
      %p255 = por %p253, %p254
      %p256 = scmp.ne.s32.totalorder %s242, %s243
      %p257 = scmp.eq.s32.totalorder %s47, 1
      %p258 = por %p256, %p257
      %p260 = scmp.ne.s32.totalorder %s243, %s259
      %p261 = scmp.eq.s32.totalorder %s47, 0
      %p262 = por %p260, %p261
      %s263 = ssub.s32 %s41, %s48
      %p264 = scmp.eq.s32.totalorder %s263, 0
      %s266 = sadd.s32 %s265, 1
      %s267 = scalar_select %p264, %s265, %s266
      %p270 = pneg %p264
      %p271 = scmp.eq.s32.totalorder %s41, 1
      %p272 = por %p270, %p271
      %p273 = scmp.ne.s32.totalorder %s265, %s268
      %p274 = scmp.eq.s32.totalorder %s41, 0
      %p275 = por %p273, %p274
      %p276 = scmp.ne.s32.totalorder %s265, %s268
      %p277 = scmp.eq.s32.totalorder %s46, 1
      %p278 = por %p276, %p277
      %p279 = scmp.ne.s32.totalorder %s268, %s269
      %p280 = scmp.eq.s32.totalorder %s46, 0
      %p281 = por %p279, %p280
      %p282 = scmp.ne.s32.totalorder %s268, %s269
      %p283 = scmp.eq.s32.totalorder %s47, 1
      %p284 = por %p282, %p283
      %p286 = scmp.ne.s32.totalorder %s269, %s285
      %p287 = scmp.eq.s32.totalorder %s47, 0
      %p288 = por %p286, %p287
      %p289 = scmp.le.s32.totalorder 1, %s41
      %p290 = scmp.lt.s32.totalorder %s41, 3
      %p291 = pnand %p289, %p290
      %p292 = pneg %p291
      // Predicated region
      $region9: #{tpu_custom_call.1} parent=5 // pred_check
        _
      $region10: #{tpu_custom_call.1} parent=5 // pred_check_branch
        %294 = sbr.rel (%p291) target = $region12
      $region11: #{tpu_custom_call.1} parent=5 // pred_region
        %s295 = ssub.s32 %s41, 1
        // Predicated region
        $region13: #{tpu_custom_call.1} parent=11 // pred_check
          %p296 = pneg %p140
        $region14: #{tpu_custom_call.1} parent=11 // pred_check_branch
          %298 = sbr.rel (%p296) target = $region16
        $region15: #{tpu_custom_call.1} parent=11 // pred_region
          _
        $region16: #{tpu_custom_call.1} parent=11 // pred_fallthru
          _
        // Predicated region
        $region17: #{tpu_custom_call.1} parent=11 // pred_check
          %p299 = pneg %p161
        $region18: #{tpu_custom_call.1} parent=11 // pred_check_branch
          %301 = sbr.rel (%p299) target = $region20
        $region19: #{tpu_custom_call.1} parent=11 // pred_region
          _
        $region20: #{tpu_custom_call.1} parent=11 // pred_fallthru
          _
        // Predicated region
        $region21: #{tpu_custom_call.1} parent=11 // pred_check
          %p302 = pneg %p182
        $region22: #{tpu_custom_call.1} parent=11 // pred_check_branch
          %304 = sbr.rel (%p302) target = $region24
        $region23: #{tpu_custom_call.1} parent=11 // pred_region
          %306 = vsyncadd [#allocation9], 0
          %s307 = sshll.u32 %s7, 4
          %s308 = int_to_ptr.hbm [resolvable:$true] %s307
          %s309 = sshll.u32 [#allocation8], 4
          %s310 = int_to_ptr.vmem [resolvable:$true] %s309
          %315 = dma.hbm_to_vmem [thread:$0]  %s308, 8192, %s310, [#allocation9], 128, 128, 8
        $region24: #{tpu_custom_call.1} parent=11 // pred_fallthru
          _
        // Predicated region
        $region25: #{tpu_custom_call.1} parent=11 // pred_check
          %p316 = pneg %p203
        $region26: #{tpu_custom_call.1} parent=11 // pred_check_branch
          %318 = sbr.rel (%p316) target = $region28
        $region27: #{tpu_custom_call.1} parent=11 // pred_region
          _
        $region28: #{tpu_custom_call.1} parent=11 // pred_fallthru
          _
      $region12: #{tpu_custom_call.1} parent=5 // pred_fallthru
        _
      %p319 = scmp.lt.s32.totalorder %s41, 2
      // Predicated region
      $region29: #{tpu_custom_call.1} parent=5 // pred_check
        %p320 = pneg %p319
      $region30: #{tpu_custom_call.1} parent=5 // pred_check_branch
        %322 = sbr.rel (%p320) target = $region32
      $region31: #{tpu_custom_call.1} parent=5 // pred_region
        // Predicated region
        $region33: #{tpu_custom_call.1} parent=31 // pred_check
          %p323 = pneg %p61
        $region34: #{tpu_custom_call.1} parent=31 // pred_check_branch
          %325 = sbr.rel (%p323) target = $region36
        $region35: #{tpu_custom_call.1} parent=31 // pred_region
          %p326 = scmp.lt.s32.totalorder %s41, 1
          %s327 = scalar_select %p326, %s41, 1
          %s328 = smul.addr %s327, 8
          %s329 = smul.addr %s328, 8
          %s330 = scalar_lea.vmem %s2, %s329
        $region36: #{tpu_custom_call.1} parent=31 // pred_fallthru
          _
        // Predicated region
        $region37: #{tpu_custom_call.1} parent=31 // pred_check
          %p331 = pneg %p87
        $region38: #{tpu_custom_call.1} parent=31 // pred_check_branch
          %333 = sbr.rel (%p331) target = $region40
        $region39: #{tpu_custom_call.1} parent=31 // pred_region
          %s334 = sand.u32 %s77, 1
          %s335 = scalar_lea.sflag [#allocation6], %s334
          %s336 = sand.u32 %s77, 1
          %s337 = smul.addr %s336, 32
          %s338 = scalar_lea.vmem [#allocation5], %s337
          %340 = vsyncadd %s335, 0
          %s341 = smul.addr %s41, 4
          %s342 = smul.addr %s341, 8
          %s343 = scalar_lea.hbm %s3, %s342
          %s344 = sshll.u32 %s343, 4
          %s345 = int_to_ptr.hbm [resolvable:$true] %s344
          %s346 = sshll.u32 %s338, 4
          %s347 = int_to_ptr.vmem [resolvable:$true] %s346
          %352 = dma.hbm_to_vmem [thread:$0]  %s345, 512, %s347, %s335, 128, 128, 8
        $region40: #{tpu_custom_call.1} parent=31 // pred_fallthru
          _
        // Predicated region
        $region41: #{tpu_custom_call.1} parent=31 // pred_check
          %p353 = pneg %p113
        $region42: #{tpu_custom_call.1} parent=31 // pred_check_branch
          %355 = sbr.rel (%p353) target = $region44
        $region43: #{tpu_custom_call.1} parent=31 // pred_region
          %p356 = scmp.lt.s32.totalorder %s41, 1
          %s357 = scalar_select %p356, %s41, 1
          %s358 = smul.addr %s357, 6
          %s359 = smul.addr %s358, 8
          %s360 = scalar_lea.vmem %s4, %s359
        $region44: #{tpu_custom_call.1} parent=31 // pred_fallthru
          _
      $region32: #{tpu_custom_call.1} parent=5 // pred_fallthru
        _
      %p361 = scmp.le.s32.totalorder 1, %s41
      %p362 = scmp.lt.s32.totalorder %s41, 3
      %p363 = pnand %p361, %p362
      %p364 = pneg %p363
      // Predicated region
      $region45: #{tpu_custom_call.1} parent=5 // pred_check
        _
      $region46: #{tpu_custom_call.1} parent=5 // pred_check_branch
        %366 = sbr.rel (%p363) target = $region48
      $region47: #{tpu_custom_call.1} parent=5 // pred_region
        %s367 = ssub.s32 %s41, 1
        %s368 = sand.u32 %s80, 1
        %s369 = scalar_lea.sflag [#allocation6], %s368
        %s370 = sand.u32 %s80, 1
        %s371 = smul.addr %s370, 32
        %s372 = scalar_lea.vmem [#allocation5], %s371
        // Predicated region
        $region49: #{tpu_custom_call.1} parent=47 // pred_check
          %p373 = pneg %p93
        $region50: #{tpu_custom_call.1} parent=47 // pred_check_branch
          %375 = sbr.rel (%p373) target = $region52
        $region51: #{tpu_custom_call.1} parent=47 // pred_region
          %377 = dma.done %s369, 512
        $region52: #{tpu_custom_call.1} parent=47 // pred_fallthru
          _
        // Predicated region
        $region53: #{tpu_custom_call.1} parent=47 // pred_check
          %p378 = pneg %p182
        $region54: #{tpu_custom_call.1} parent=47 // pred_check_branch
          %380 = sbr.rel (%p378) target = $region56
        $region55: #{tpu_custom_call.1} parent=47 // pred_region
          %382 = dma.done [#allocation9], 8192
        $region56: #{tpu_custom_call.1} parent=47 // pred_fallthru
          _
        %p383 = scmp.lt.s32.totalorder %s46, 1
        %s384 = scalar_select %p383, %s46, 1
        %s385 = smul.addr %s384, 8
        %s386 = smul.addr %s385, 8
        %s387 = scalar_lea.vmem %s2, %s386
        %p388 = pneg %p67
        %p389 = pneg %p64
        %s390 = sand.u32 %s80, 1
        %s391 = scalar_lea.sflag [#allocation6], %s390
        %s392 = sand.u32 %s80, 1
        %s393 = smul.addr %s392, 32
        %s394 = scalar_lea.vmem [#allocation5], %s393
        %p395 = pneg %p93
        %p396 = pneg %p90
        %p397 = scmp.lt.s32.totalorder %s46, 1
        %s398 = scalar_select %p397, %s46, 1
        %s399 = smul.addr %s398, 6
        %s400 = smul.addr %s399, 8
        %s401 = scalar_lea.vmem %s4, %s400
        %p402 = pneg %p119
        %p403 = pneg %p116
        %p404 = pneg %p140
        %p405 = pneg %p137
        %p406 = pneg %p161
        %p407 = pneg %p158
        %p408 = pneg %p182
        %p409 = pneg %p179
        %p410 = pneg %p203
        %p411 = pneg %p200
        %p412 = pneg %p229
        %p413 = pneg %p226
        %s414 = sand.u32 %s216, 1
        %s415 = scalar_lea.sflag [#allocation7], %s414
        %s416 = sand.u32 %s216, 1
        %s417 = smul.addr %s416, 16
        %s418 = scalar_lea.vmem [#allocation10], %s417
        %p419 = pneg %p255
        %p420 = pneg %p252
        %s421 = sand.u32 %s46, 1
        %s422 = scalar_lea.sflag [#allocation12], %s421
        %s423 = sand.u32 %s242, 1
        %s424 = smul.addr %s423, 24
        %s425 = scalar_lea.vmem [#allocation11], %s424
        %p426 = pneg %p281
        %p427 = pneg %p278
        %s428 = sand.u32 %s46, 1
        %s429 = scalar_lea.sflag [#allocation12], %s428
        %s430 = sand.u32 %s268, 1
        %s431 = scalar_lea.vmem [#allocation13], %s430
        %p432 = scmp.lt.s32.totalorder %s46, 1
        %s433 = scalar_select %p432, %s46, 1
        %s434 = smul.addr %s433, 8
        %s435 = smul.addr %s434, 8
        %s436 = scalar_lea.vmem %s2, %s435
        %p437 = scmp.lt.s32.totalorder %s46, 1
        %s438 = scalar_select %p437, %s46, 1
        %s439 = smul.addr %s438, 6
        %s440 = smul.addr %s439, 8
        %s441 = scalar_lea.vmem %s4, %s440
        %s442 = smul.u32 %s46, 128
        %s443 = sld [smem:[#allocation3 + %s442]]
        %s444 = sld [smem:[#allocation4 + %s442]]
        %s445 = scalar_lea.vmem %s436, %s443
        %v446 = vld [vmem:[%s445] sm:$0x1]
        %s447 = scalar_lea.vmem %s372, %s444 [#allocation5]
        %v448 = vld [vmem:[%s447] sm:$0x1]
        %s449 = sadd.s32 %s442, 1
        %s450 = sld [smem:[#allocation3 + %s449]]
        %s451 = sld [smem:[#allocation4 + %s449]]
        %s452 = scalar_lea.vmem %s436, %s450
        %v453 = vld [vmem:[%s452] sm:$0x1]
        %s454 = scalar_lea.vmem %s372, %s451 [#allocation5]
        %v455 = vld [vmem:[%s454] sm:$0x1]
        %s456 = sadd.s32 %s442, 2
        %s457 = sld [smem:[#allocation3 + %s456]]
        %s458 = sld [smem:[#allocation4 + %s456]]
        %s459 = scalar_lea.vmem %s436, %s457
        %v460 = vld [vmem:[%s459] sm:$0x1]
        %s461 = scalar_lea.vmem %s372, %s458 [#allocation5]
        %v462 = vld [vmem:[%s461] sm:$0x1]
        %s463 = sadd.s32 %s442, 3
        %s464 = sld [smem:[#allocation3 + %s463]]
        %s465 = sld [smem:[#allocation4 + %s463]]
        %s466 = scalar_lea.vmem %s436, %s464
        %v467 = vld [vmem:[%s466] sm:$0x1]
        %s468 = scalar_lea.vmem %s372, %s465 [#allocation5]
        %v469 = vld [vmem:[%s468] sm:$0x1]
        %s470 = sadd.s32 %s442, 4
        %s471 = sld [smem:[#allocation3 + %s470]]
        %s472 = sld [smem:[#allocation4 + %s470]]
        %s473 = scalar_lea.vmem %s436, %s471
        %v474 = vld [vmem:[%s473] sm:$0x1]
        %s475 = scalar_lea.vmem %s372, %s472 [#allocation5]
        %v476 = vld [vmem:[%s475] sm:$0x1]
        %s477 = sadd.s32 %s442, 5
        %s478 = sld [smem:[#allocation3 + %s477]]
        %s479 = sld [smem:[#allocation4 + %s477]]
        %s480 = scalar_lea.vmem %s436, %s478
        %v481 = vld [vmem:[%s480] sm:$0x1]
        %s482 = scalar_lea.vmem %s372, %s479 [#allocation5]
        %v483 = vld [vmem:[%s482] sm:$0x1]
        %s484 = sadd.s32 %s442, 6
        %s485 = sld [smem:[#allocation3 + %s484]]
        %s486 = sld [smem:[#allocation4 + %s484]]
        %s487 = scalar_lea.vmem %s436, %s485
        %v488 = vld [vmem:[%s487] sm:$0x1]
        %s489 = scalar_lea.vmem %s372, %s486 [#allocation5]
        %v490 = vld [vmem:[%s489] sm:$0x1]
        %s491 = sadd.s32 %s442, 7
        %s492 = sld [smem:[#allocation3 + %s491]]
        %s493 = sld [smem:[#allocation4 + %s491]]
        %s494 = scalar_lea.vmem %s436, %s492
        %v495 = vld [vmem:[%s494] sm:$0x1]
        %s496 = scalar_lea.vmem %s372, %s493 [#allocation5]
        %v497 = vld [vmem:[%s496] sm:$0x1]
        %v499 = vrot.slane %v453, 7
        %v502 = vrot.slane %v460, 6
        %v505 = vrot.slane %v467, 5
        %v508 = vrot.slane %v474, 4
        %v511 = vrot.slane %v481, 3
        %v514 = vrot.slane %v488, 2
        %v517 = vrot.slane %v495, 1
        %vm519 = vcmask 1040384
        %v520 = vsel %vm519, %v446, %v499
        %vm521 = vcmask 1041408
        %v522 = vsel %vm521, %v520, %v502
        %vm523 = vcmask 1042432
        %v524 = vsel %vm523, %v522, %v505
        %vm525 = vcmask 1043456
        %v526 = vsel %vm525, %v524, %v508
        %vm527 = vcmask 1044480
        %v528 = vsel %vm527, %v526, %v511
        %vm529 = vcmask 1045504
        %v530 = vsel %vm529, %v528, %v514
        %vm531 = vcmask 1046528
        %v532 = vsel %vm531, %v530, %v517
        %v534 = vrot.slane %v455, 7
        %v537 = vrot.slane %v462, 6
        %v540 = vrot.slane %v469, 5
        %v543 = vrot.slane %v476, 4
        %v546 = vrot.slane %v483, 3
        %v549 = vrot.slane %v490, 2
        %v552 = vrot.slane %v497, 1
        %v554 = vsel %vm519, %v448, %v534
        %v555 = vsel %vm521, %v554, %v537
        %v556 = vsel %vm523, %v555, %v540
        %v557 = vsel %vm525, %v556, %v543
        %v558 = vsel %vm527, %v557, %v546
        %v559 = vsel %vm529, %v558, %v549
        %v560 = vsel %vm531, %v559, %v552
        %561 = vst [vmem:[%s418] sm:$0xff] %v532
        %562 = vst [vmem:[%s418 + $0x8] sm:$0xff] %v560
        %v563 = vld [vmem:[%s441] sm:$0xff]
        %v564 = vld [vmem:[%s441 + $0x8] sm:$0xff]
        %v565 = vld [vmem:[%s441 + $0x10] sm:$0xff]
        %v566 = vld [vmem:[%s441 + $0x18] sm:$0x1]
        %v567 = vld [vmem:[%s441 + $0x20] sm:$0x1]
        %v568 = vld [vmem:[%s441 + $0x28] sm:$0x1]
        %v569 = vld [vmem:[%s5] sm:$0x7]
        %v571 = vperm.slane %v569, 0
        %v572 = vperm.slane %v569, 1
        %v573 = vperm.slane %v569, 2
        %v577 = vmul.f32 %v563, %v571
        %v578 = vmul.f32 %v564, %v572
        %v579 = vmul.f32 %v565, %v573
        %v580 = vmul.f32 %v566, %v571
        %v581 = vmul.f32 %v567, %v572
        %v582 = vmul.f32 %v568, %v573
        %v583 = vld [vmem:[%s6] sm:$0x7]
        %v585 = vperm.slane %v583, 0
        %v586 = vperm.slane %v583, 1
        %v587 = vperm.slane %v583, 2
        %v591 = vadd.f32 %v577, %v585
        %v592 = vadd.f32 %v578, %v586
        %v593 = vadd.f32 %v579, %v587
        %v594 = vadd.f32 %v580, %v585
        %v595 = vadd.f32 %v581, %v586
        %v596 = vadd.f32 %v582, %v587
        %v597 = vand.u32 2147483647, %v591
        %vm598 = vcmp.le.f32.partialorder %v597, 0.7853982
        %vm599 = vcmp.lt.s32.totalorder %v591, 0
        %v600 = vand.u32 %v591, 2139095040
        %v601 = vshrl.u32 %v600, 23
        %v602 = vsub.s32 %v601, 127
        %v603 = vand.u32 2147483647, %v591
        %v604 = vand.u32 %v603, 8388607
        %v605 = vor.u32 %v604, 8388608
        %v606 = vsub.s32 0, %v605
        %v607 = vadd.s32 %v602, 1
        %vm608 = vcmp.gt.s32.totalorder %v607, 0
        %v609 = vsel %vm608, %v607, 0
        %v610 = vshrl.u32 %v609, 5
        %v611 = vand.u32 %v609, 31
        %v612 = vsub.s32 32, %v611
        %v613 = vshrl.u32 683565275, %v612
        %v614 = vshll.u32 683565275, %v611
        %v615 = vshrl.u32 2475754826, %v612
        %v616 = vor.u32 %v614, %v615
        %v617 = vshll.u32 2475754826, %v611
        %v618 = vshrl.u32 2131351028, %v612
        %v619 = vor.u32 %v617, %v618
        %v620 = vshll.u32 2131351028, %v611
        %v621 = vshrl.u32 2102212464, %v612
        %v622 = vor.u32 %v620, %v621
        %v623 = vshll.u32 2102212464, %v611
        %v624 = vshrl.u32 920167782, %v612
        %v625 = vor.u32 %v623, %v624
        %v626 = vshll.u32 920167782, %v611
        %v627 = vshrl.u32 1326507024, %v612
        %v628 = vor.u32 %v626, %v627
        %vm629 = vcmp.lt.s32.totalorder %v610, 1
        %vm630 = vcmp.lt.s32.totalorder %v610, 2
        %vm631 = vcmp.lt.s32.totalorder %v610, 3
        %vm632 = vcmp.lt.s32.totalorder %v610, 4
        %v633 = vsel %vm629, %v613, %v616
        %v634 = vsel %vm632, %v622, 2102212464
        %v635 = vsel %vm631, %v619, %v634
        %v636 = vsel %vm630, %v633, %v635
        %v637 = vsel %vm629, %v616, %v619
        %v638 = vsel %vm632, %v625, 920167782
        %v639 = vsel %vm631, %v622, %v638
        %v640 = vsel %vm630, %v637, %v639
        %v641 = vsel %vm629, %v619, %v622
        %v642 = vsel %vm632, %v628, 1326507024
        %v643 = vsel %vm631, %v625, %v642
        %v644 = vsel %vm630, %v641, %v643
        %v645 = vshll.u32 %v605, 8
        %v646 = vand.u32 %v645, 65535
        %v647 = vshrl.u32 %v645, 16
        %v648 = vand.u32 %v644, 65535
        %v649 = vshrl.u32 %v644, 16
        %v650 = vmul.u32 %v646, %v648
        %v651 = vmul.u32 %v646, %v649
        %v652 = vmul.u32 %v647, %v648
        %v653 = vmul.u32 %v647, %v649
        %v654 = vshll.u32 %v651, 16
        %v655 = vshrl.u32 %v651, 16
        %v656 = vshll.u32 %v652, 16
        %v657 = vshrl.u32 %v652, 16
        %vm658 = vc.u32 %v650, %v654
        %v659 = vsel %vm658, 1, 0
        %v660 = vadd.s32 %v650, %v654
        %v661 = vadd.s32 %v653, %v659
        %vm662 = vc.u32 %v660, %v656
        %v663 = vsel %vm662, 1, 0
        %v664 = vadd.s32 %v660, %v656
        %v665 = vadd.s32 %v661, %v663
        %v666 = vadd.s32 %v665, %v655
        %v667 = vadd.s32 %v666, %v657
        %v668 = vand.u32 %v645, 65535
        %v669 = vshrl.u32 %v645, 16
        %v670 = vand.u32 %v640, 65535
        %v671 = vshrl.u32 %v640, 16
        %v672 = vmul.u32 %v668, %v670
        %v673 = vmul.u32 %v668, %v671
        %v674 = vmul.u32 %v669, %v670
        %v675 = vmul.u32 %v669, %v671
        %v676 = vshll.u32 %v673, 16
        %v677 = vshrl.u32 %v673, 16
        %v678 = vshll.u32 %v674, 16
        %v679 = vshrl.u32 %v674, 16
        %vm680 = vc.u32 %v672, %v676
        %v681 = vsel %vm680, 1, 0
        %v682 = vadd.s32 %v672, %v676
        %v683 = vadd.s32 %v675, %v681
        %vm684 = vc.u32 %v682, %v678
        %v685 = vsel %vm684, 1, 0
        %v686 = vadd.s32 %v682, %v678
        %v687 = vadd.s32 %v683, %v685
        %v688 = vadd.s32 %v687, %v677
        %v689 = vadd.s32 %v688, %v679
        %v690 = vmul.u32 %v645, %v636
        %v691 = vadd.s32 %v667, %v686
        %vm692 = vc.u32 %v667, %v686
        %v693 = vadd.s32 %v689, 1
        %v694 = vsel %vm692, %v693, %v689
        %v695 = vadd.s32 %v690, %v694
        %v696 = vadd.s32 %v695, 536870912
        %v697 = vshrl.u32 %v696, 30
        %v698 = vshll.u32 %v697, 30
        %v699 = vsub.s32 %v695, %v698
        %vm700 = vcmp.lt.s32.totalorder %v699, 0
        %v701 = vsub.s32 0, %v699
        %v702 = vsel %vm700, %v701, %v699
        %v703 = vclz %v702
        %v704 = vsub.s32 %v703, 2
        %vm705 = vcmp.gt.s32.totalorder 0, %v704
        %v706 = vsel %vm705, 0, %v704
        %v707 = vsub.s32 32, %v706
        %v708 = vshll.u32 %v699, %v706
        %v709 = vshrl.u32 %v691, %v707
        %v710 = vor.u32 %v708, %v709
        %v711 = vsub.s32 4294967266, %v706
        %v712 = vadd.s32 %v711, 127
        %v713 = vshll.u32 %v712, 23
        %v714 = vor.u32 4788187, %v713
        %v715 = vand.u32 2147483647, %v714
        %v717 = vcvt.s32.f32 %v710
        %v718 = vmul.f32 %v717, %v715
        %v719 = vxor.u32 %v718, 2147483648
        %v720 = vsel %vm599, %v719, %v718
        %v721 = vsub.s32 4, %v697
        %v722 = vsel %vm599, %v721, %v697
        %v723 = vsel %vm598, %v591, %v720
        %v724 = vsel %vm598, 0, %v722
        %v725 = vmul.f32 %v723, %v723
        %v726 = vmul.f32 %v725, -0.001358992
        %v727 = vadd.f32 %v726, 0.041655596
        %v728 = vmul.f32 %v725, %v727
        %v729 = vadd.f32 %v728, -0.4999988
        %v730 = vmul.f32 %v725, %v729
        %v731 = vadd.f32 1.0, %v730
        %v732 = vmul.f32 %v723, %v723
        %v733 = vmul.f32 %v732, -0.00019511016
        %v734 = vadd.f32 %v733, 0.008332121
        %v735 = vmul.f32 %v732, %v734
        %v736 = vadd.f32 %v735, -0.16666654
        %v737 = vmul.f32 %v732, %v736
        %v738 = vadd.f32 %v737, 1.0
        %v739 = vmul.f32 %v738, %v723
        %vm740 = vweird.f32 %v591
        %v741 = vadd.s32 %v724, 3
        %v742 = vand.u32 %v741, 3
        %vm743 = vcmp.lt.s32.totalorder %v742, 2
        %vm744 = vcmp.eq.s32.totalorder %v742, 0
        %v745 = vxor.u32 %v739, 2147483648
        %v746 = vsel %vm744, %v731, %v745
        %vm747 = vcmp.eq.s32.totalorder %v742, 2
        %v748 = vxor.u32 %v731, 2147483648
        %v749 = vsel %vm747, %v748, %v739
        %v750 = vsel %vm743, %v746, %v749
        %v751 = vsel %vm740, nan, %v750
        %v752 = vand.u32 2147483647, %v592
        %vm753 = vcmp.le.f32.partialorder %v752, 0.7853982
        %vm754 = vcmp.lt.s32.totalorder %v592, 0
        %v755 = vand.u32 %v592, 2139095040
        %v756 = vshrl.u32 %v755, 23
        %v757 = vsub.s32 %v756, 127
        %v758 = vand.u32 2147483647, %v592
        %v759 = vand.u32 %v758, 8388607
        %v760 = vor.u32 %v759, 8388608
        %v761 = vsub.s32 0, %v760
        %v762 = vadd.s32 %v757, 1
        %vm763 = vcmp.gt.s32.totalorder %v762, 0
        %v764 = vsel %vm763, %v762, 0
        %v765 = vshrl.u32 %v764, 5
        %v766 = vand.u32 %v764, 31
        %v767 = vsub.s32 32, %v766
        %v768 = vshrl.u32 683565275, %v767
        %v769 = vshll.u32 683565275, %v766
        %v770 = vshrl.u32 2475754826, %v767
        %v771 = vor.u32 %v769, %v770
        %v772 = vshll.u32 2475754826, %v766
        %v773 = vshrl.u32 2131351028, %v767
        %v774 = vor.u32 %v772, %v773
        %v775 = vshll.u32 2131351028, %v766
        %v776 = vshrl.u32 2102212464, %v767
        %v777 = vor.u32 %v775, %v776
        %v778 = vshll.u32 2102212464, %v766
        %v779 = vshrl.u32 920167782, %v767
        %v780 = vor.u32 %v778, %v779
        %v781 = vshll.u32 920167782, %v766
        %v782 = vshrl.u32 1326507024, %v767
        %v783 = vor.u32 %v781, %v782
        %vm784 = vcmp.lt.s32.totalorder %v765, 1
        %vm785 = vcmp.lt.s32.totalorder %v765, 2
        %vm786 = vcmp.lt.s32.totalorder %v765, 3
        %vm787 = vcmp.lt.s32.totalorder %v765, 4
        %v788 = vsel %vm784, %v768, %v771
        %v789 = vsel %vm787, %v777, 2102212464
        %v790 = vsel %vm786, %v774, %v789
        %v791 = vsel %vm785, %v788, %v790
        %v792 = vsel %vm784, %v771, %v774
        %v793 = vsel %vm787, %v780, 920167782
        %v794 = vsel %vm786, %v777, %v793
        %v795 = vsel %vm785, %v792, %v794
        %v796 = vsel %vm784, %v774, %v777
        %v797 = vsel %vm787, %v783, 1326507024
        %v798 = vsel %vm786, %v780, %v797
        %v799 = vsel %vm785, %v796, %v798
        %v800 = vshll.u32 %v760, 8
        %v801 = vand.u32 %v800, 65535
        %v802 = vshrl.u32 %v800, 16
        %v803 = vand.u32 %v799, 65535
        %v804 = vshrl.u32 %v799, 16
        %v805 = vmul.u32 %v801, %v803
        %v806 = vmul.u32 %v801, %v804
        %v807 = vmul.u32 %v802, %v803
        %v808 = vmul.u32 %v802, %v804
        %v809 = vshll.u32 %v806, 16
        %v810 = vshrl.u32 %v806, 16
        %v811 = vshll.u32 %v807, 16
        %v812 = vshrl.u32 %v807, 16
        %vm813 = vc.u32 %v805, %v809
        %v814 = vsel %vm813, 1, 0
        %v815 = vadd.s32 %v805, %v809
        %v816 = vadd.s32 %v808, %v814
        %vm817 = vc.u32 %v815, %v811
        %v818 = vsel %vm817, 1, 0
        %v819 = vadd.s32 %v815, %v811
        %v820 = vadd.s32 %v816, %v818
        %v821 = vadd.s32 %v820, %v810
        %v822 = vadd.s32 %v821, %v812
        %v823 = vand.u32 %v800, 65535
        %v824 = vshrl.u32 %v800, 16
        %v825 = vand.u32 %v795, 65535
        %v826 = vshrl.u32 %v795, 16
        %v827 = vmul.u32 %v823, %v825
        %v828 = vmul.u32 %v823, %v826
        %v829 = vmul.u32 %v824, %v825
        %v830 = vmul.u32 %v824, %v826
        %v831 = vshll.u32 %v828, 16
        %v832 = vshrl.u32 %v828, 16
        %v833 = vshll.u32 %v829, 16
        %v834 = vshrl.u32 %v829, 16
        %vm835 = vc.u32 %v827, %v831
        %v836 = vsel %vm835, 1, 0
        %v837 = vadd.s32 %v827, %v831
        %v838 = vadd.s32 %v830, %v836
        %vm839 = vc.u32 %v837, %v833
        %v840 = vsel %vm839, 1, 0
        %v841 = vadd.s32 %v837, %v833
        %v842 = vadd.s32 %v838, %v840
        %v843 = vadd.s32 %v842, %v832
        %v844 = vadd.s32 %v843, %v834
        %v845 = vmul.u32 %v800, %v791
        %v846 = vadd.s32 %v822, %v841
        %vm847 = vc.u32 %v822, %v841
        %v848 = vadd.s32 %v844, 1
        %v849 = vsel %vm847, %v848, %v844
        %v850 = vadd.s32 %v845, %v849
        %v851 = vadd.s32 %v850, 536870912
        %v852 = vshrl.u32 %v851, 30
        %v853 = vshll.u32 %v852, 30
        %v854 = vsub.s32 %v850, %v853
        %vm855 = vcmp.lt.s32.totalorder %v854, 0
        %v856 = vsub.s32 0, %v854
        %v857 = vsel %vm855, %v856, %v854
        %v858 = vclz %v857
        %v859 = vsub.s32 %v858, 2
        %vm860 = vcmp.gt.s32.totalorder 0, %v859
        %v861 = vsel %vm860, 0, %v859
        %v862 = vsub.s32 32, %v861
        %v863 = vshll.u32 %v854, %v861
        %v864 = vshrl.u32 %v846, %v862
        %v865 = vor.u32 %v863, %v864
        %v866 = vsub.s32 4294967266, %v861
        %v867 = vadd.s32 %v866, 127
        %v868 = vshll.u32 %v867, 23
        %v869 = vor.u32 4788187, %v868
        %v870 = vand.u32 2147483647, %v869
        %v872 = vcvt.s32.f32 %v865
        %v873 = vmul.f32 %v872, %v870
        %v874 = vxor.u32 %v873, 2147483648
        %v875 = vsel %vm754, %v874, %v873
        %v876 = vsub.s32 4, %v852
        %v877 = vsel %vm754, %v876, %v852
        %v878 = vsel %vm753, %v592, %v875
        %v879 = vsel %vm753, 0, %v877
        %v880 = vmul.f32 %v878, %v878
        %v881 = vmul.f32 %v880, -0.001358992
        %v882 = vadd.f32 %v881, 0.041655596
        %v883 = vmul.f32 %v880, %v882
        %v884 = vadd.f32 %v883, -0.4999988
        %v885 = vmul.f32 %v880, %v884
        %v886 = vadd.f32 1.0, %v885
        %v887 = vmul.f32 %v878, %v878
        %v888 = vmul.f32 %v887, -0.00019511016
        %v889 = vadd.f32 %v888, 0.008332121
        %v890 = vmul.f32 %v887, %v889
        %v891 = vadd.f32 %v890, -0.16666654
        %v892 = vmul.f32 %v887, %v891
        %v893 = vadd.f32 %v892, 1.0
        %v894 = vmul.f32 %v893, %v878
        %vm895 = vweird.f32 %v592
        %v896 = vadd.s32 %v879, 3
        %v897 = vand.u32 %v896, 3
        %vm898 = vcmp.lt.s32.totalorder %v897, 2
        %vm899 = vcmp.eq.s32.totalorder %v897, 0
        %v900 = vxor.u32 %v894, 2147483648
        %v901 = vsel %vm899, %v886, %v900
        %vm902 = vcmp.eq.s32.totalorder %v897, 2
        %v903 = vxor.u32 %v886, 2147483648
        %v904 = vsel %vm902, %v903, %v894
        %v905 = vsel %vm898, %v901, %v904
        %v906 = vsel %vm895, nan, %v905
        %v907 = vand.u32 2147483647, %v593
        %vm908 = vcmp.le.f32.partialorder %v907, 0.7853982
        %vm909 = vcmp.lt.s32.totalorder %v593, 0
        %v910 = vand.u32 %v593, 2139095040
        %v911 = vshrl.u32 %v910, 23
        %v912 = vsub.s32 %v911, 127
        %v913 = vand.u32 2147483647, %v593
        %v914 = vand.u32 %v913, 8388607
        %v915 = vor.u32 %v914, 8388608
        %v916 = vsub.s32 0, %v915
        %v917 = vadd.s32 %v912, 1
        %vm918 = vcmp.gt.s32.totalorder %v917, 0
        %v919 = vsel %vm918, %v917, 0
        %v920 = vshrl.u32 %v919, 5
        %v921 = vand.u32 %v919, 31
        %v922 = vsub.s32 32, %v921
        %v923 = vshrl.u32 683565275, %v922
        %v924 = vshll.u32 683565275, %v921
        %v925 = vshrl.u32 2475754826, %v922
        %v926 = vor.u32 %v924, %v925
        %v927 = vshll.u32 2475754826, %v921
        %v928 = vshrl.u32 2131351028, %v922
        %v929 = vor.u32 %v927, %v928
        %v930 = vshll.u32 2131351028, %v921
        %v931 = vshrl.u32 2102212464, %v922
        %v932 = vor.u32 %v930, %v931
        %v933 = vshll.u32 2102212464, %v921
        %v934 = vshrl.u32 920167782, %v922
        %v935 = vor.u32 %v933, %v934
        %v936 = vshll.u32 920167782, %v921
        %v937 = vshrl.u32 1326507024, %v922
        %v938 = vor.u32 %v936, %v937
        %vm939 = vcmp.lt.s32.totalorder %v920, 1
        %vm940 = vcmp.lt.s32.totalorder %v920, 2
        %vm941 = vcmp.lt.s32.totalorder %v920, 3
        %vm942 = vcmp.lt.s32.totalorder %v920, 4
        %v943 = vsel %vm939, %v923, %v926
        %v944 = vsel %vm942, %v932, 2102212464
        %v945 = vsel %vm941, %v929, %v944
        %v946 = vsel %vm940, %v943, %v945
        %v947 = vsel %vm939, %v926, %v929
        %v948 = vsel %vm942, %v935, 920167782
        %v949 = vsel %vm941, %v932, %v948
        %v950 = vsel %vm940, %v947, %v949
        %v951 = vsel %vm939, %v929, %v932
        %v952 = vsel %vm942, %v938, 1326507024
        %v953 = vsel %vm941, %v935, %v952
        %v954 = vsel %vm940, %v951, %v953
        %v955 = vshll.u32 %v915, 8
        %v956 = vand.u32 %v955, 65535
        %v957 = vshrl.u32 %v955, 16
        %v958 = vand.u32 %v954, 65535
        %v959 = vshrl.u32 %v954, 16
        %v960 = vmul.u32 %v956, %v958
        %v961 = vmul.u32 %v956, %v959
        %v962 = vmul.u32 %v957, %v958
        %v963 = vmul.u32 %v957, %v959
        %v964 = vshll.u32 %v961, 16
        %v965 = vshrl.u32 %v961, 16
        %v966 = vshll.u32 %v962, 16
        %v967 = vshrl.u32 %v962, 16
        %vm968 = vc.u32 %v960, %v964
        %v969 = vsel %vm968, 1, 0
        %v970 = vadd.s32 %v960, %v964
        %v971 = vadd.s32 %v963, %v969
        %vm972 = vc.u32 %v970, %v966
        %v973 = vsel %vm972, 1, 0
        %v974 = vadd.s32 %v970, %v966
        %v975 = vadd.s32 %v971, %v973
        %v976 = vadd.s32 %v975, %v965
        %v977 = vadd.s32 %v976, %v967
        %v978 = vand.u32 %v955, 65535
        %v979 = vshrl.u32 %v955, 16
        %v980 = vand.u32 %v950, 65535
        %v981 = vshrl.u32 %v950, 16
        %v982 = vmul.u32 %v978, %v980
        %v983 = vmul.u32 %v978, %v981
        %v984 = vmul.u32 %v979, %v980
        %v985 = vmul.u32 %v979, %v981
        %v986 = vshll.u32 %v983, 16
        %v987 = vshrl.u32 %v983, 16
        %v988 = vshll.u32 %v984, 16
        %v989 = vshrl.u32 %v984, 16
        %vm990 = vc.u32 %v982, %v986
        %v991 = vsel %vm990, 1, 0
        %v992 = vadd.s32 %v982, %v986
        %v993 = vadd.s32 %v985, %v991
        %vm994 = vc.u32 %v992, %v988
        %v995 = vsel %vm994, 1, 0
        %v996 = vadd.s32 %v992, %v988
        %v997 = vadd.s32 %v993, %v995
        %v998 = vadd.s32 %v997, %v987
        %v999 = vadd.s32 %v998, %v989
        %v1000 = vmul.u32 %v955, %v946
        %v1001 = vadd.s32 %v977, %v996
        %vm1002 = vc.u32 %v977, %v996
        %v1003 = vadd.s32 %v999, 1
        %v1004 = vsel %vm1002, %v1003, %v999
        %v1005 = vadd.s32 %v1000, %v1004
        %v1006 = vadd.s32 %v1005, 536870912
        %v1007 = vshrl.u32 %v1006, 30
        %v1008 = vshll.u32 %v1007, 30
        %v1009 = vsub.s32 %v1005, %v1008
        %vm1010 = vcmp.lt.s32.totalorder %v1009, 0
        %v1011 = vsub.s32 0, %v1009
        %v1012 = vsel %vm1010, %v1011, %v1009
        %v1013 = vclz %v1012
        %v1014 = vsub.s32 %v1013, 2
        %vm1015 = vcmp.gt.s32.totalorder 0, %v1014
        %v1016 = vsel %vm1015, 0, %v1014
        %v1017 = vsub.s32 32, %v1016
        %v1018 = vshll.u32 %v1009, %v1016
        %v1019 = vshrl.u32 %v1001, %v1017
        %v1020 = vor.u32 %v1018, %v1019
        %v1021 = vsub.s32 4294967266, %v1016
        %v1022 = vadd.s32 %v1021, 127
        %v1023 = vshll.u32 %v1022, 23
        %v1024 = vor.u32 4788187, %v1023
        %v1025 = vand.u32 2147483647, %v1024
        %v1027 = vcvt.s32.f32 %v1020
        %v1028 = vmul.f32 %v1027, %v1025
        %v1029 = vxor.u32 %v1028, 2147483648
        %v1030 = vsel %vm909, %v1029, %v1028
        %v1031 = vsub.s32 4, %v1007
        %v1032 = vsel %vm909, %v1031, %v1007
        %v1033 = vsel %vm908, %v593, %v1030
        %v1034 = vsel %vm908, 0, %v1032
        %v1035 = vmul.f32 %v1033, %v1033
        %v1036 = vmul.f32 %v1035, -0.001358992
        %v1037 = vadd.f32 %v1036, 0.041655596
        %v1038 = vmul.f32 %v1035, %v1037
        %v1039 = vadd.f32 %v1038, -0.4999988
        %v1040 = vmul.f32 %v1035, %v1039
        %v1041 = vadd.f32 1.0, %v1040
        %v1042 = vmul.f32 %v1033, %v1033
        %v1043 = vmul.f32 %v1042, -0.00019511016
        %v1044 = vadd.f32 %v1043, 0.008332121
        %v1045 = vmul.f32 %v1042, %v1044
        %v1046 = vadd.f32 %v1045, -0.16666654
        %v1047 = vmul.f32 %v1042, %v1046
        %v1048 = vadd.f32 %v1047, 1.0
        %v1049 = vmul.f32 %v1048, %v1033
        %vm1050 = vweird.f32 %v593
        %v1051 = vadd.s32 %v1034, 3
        %v1052 = vand.u32 %v1051, 3
        %vm1053 = vcmp.lt.s32.totalorder %v1052, 2
        %vm1054 = vcmp.eq.s32.totalorder %v1052, 0
        %v1055 = vxor.u32 %v1049, 2147483648
        %v1056 = vsel %vm1054, %v1041, %v1055
        %vm1057 = vcmp.eq.s32.totalorder %v1052, 2
        %v1058 = vxor.u32 %v1041, 2147483648
        %v1059 = vsel %vm1057, %v1058, %v1049
        %v1060 = vsel %vm1053, %v1056, %v1059
        %v1061 = vsel %vm1050, nan, %v1060
        %v1062 = vand.u32 2147483647, %v594
        %vm1063 = vcmp.le.f32.partialorder %v1062, 0.7853982
        %vm1064 = vcmp.lt.s32.totalorder %v594, 0
        %v1065 = vand.u32 %v594, 2139095040
        %v1066 = vshrl.u32 %v1065, 23
        %v1067 = vsub.s32 %v1066, 127
        %v1068 = vand.u32 2147483647, %v594
        %v1069 = vand.u32 %v1068, 8388607
        %v1070 = vor.u32 %v1069, 8388608
        %v1071 = vsub.s32 0, %v1070
        %v1072 = vadd.s32 %v1067, 1
        %vm1073 = vcmp.gt.s32.totalorder %v1072, 0
        %v1074 = vsel %vm1073, %v1072, 0
        %v1075 = vshrl.u32 %v1074, 5
        %v1076 = vand.u32 %v1074, 31
        %v1077 = vsub.s32 32, %v1076
        %v1078 = vshrl.u32 683565275, %v1077
        %v1079 = vshll.u32 683565275, %v1076
        %v1080 = vshrl.u32 2475754826, %v1077
        %v1081 = vor.u32 %v1079, %v1080
        %v1082 = vshll.u32 2475754826, %v1076
        %v1083 = vshrl.u32 2131351028, %v1077
        %v1084 = vor.u32 %v1082, %v1083
        %v1085 = vshll.u32 2131351028, %v1076
        %v1086 = vshrl.u32 2102212464, %v1077
        %v1087 = vor.u32 %v1085, %v1086
        %v1088 = vshll.u32 2102212464, %v1076
        %v1089 = vshrl.u32 920167782, %v1077
        %v1090 = vor.u32 %v1088, %v1089
        %v1091 = vshll.u32 920167782, %v1076
        %v1092 = vshrl.u32 1326507024, %v1077
        %v1093 = vor.u32 %v1091, %v1092
        %vm1094 = vcmp.lt.s32.totalorder %v1075, 1
        %vm1095 = vcmp.lt.s32.totalorder %v1075, 2
        %vm1096 = vcmp.lt.s32.totalorder %v1075, 3
        %vm1097 = vcmp.lt.s32.totalorder %v1075, 4
        %v1098 = vsel %vm1094, %v1078, %v1081
        %v1099 = vsel %vm1097, %v1087, 2102212464
        %v1100 = vsel %vm1096, %v1084, %v1099
        %v1101 = vsel %vm1095, %v1098, %v1100
        %v1102 = vsel %vm1094, %v1081, %v1084
        %v1103 = vsel %vm1097, %v1090, 920167782
        %v1104 = vsel %vm1096, %v1087, %v1103
        %v1105 = vsel %vm1095, %v1102, %v1104
        %v1106 = vsel %vm1094, %v1084, %v1087
        %v1107 = vsel %vm1097, %v1093, 1326507024
        %v1108 = vsel %vm1096, %v1090, %v1107
        %v1109 = vsel %vm1095, %v1106, %v1108
        %v1110 = vshll.u32 %v1070, 8
        %v1111 = vand.u32 %v1110, 65535
        %v1112 = vshrl.u32 %v1110, 16
        %v1113 = vand.u32 %v1109, 65535
        %v1114 = vshrl.u32 %v1109, 16
        %v1115 = vmul.u32 %v1111, %v1113
        %v1116 = vmul.u32 %v1111, %v1114
        %v1117 = vmul.u32 %v1112, %v1113
        %v1118 = vmul.u32 %v1112, %v1114
        %v1119 = vshll.u32 %v1116, 16
        %v1120 = vshrl.u32 %v1116, 16
        %v1121 = vshll.u32 %v1117, 16
        %v1122 = vshrl.u32 %v1117, 16
        %vm1123 = vc.u32 %v1115, %v1119
        %v1124 = vsel %vm1123, 1, 0
        %v1125 = vadd.s32 %v1115, %v1119
        %v1126 = vadd.s32 %v1118, %v1124
        %vm1127 = vc.u32 %v1125, %v1121
        %v1128 = vsel %vm1127, 1, 0
        %v1129 = vadd.s32 %v1125, %v1121
        %v1130 = vadd.s32 %v1126, %v1128
        %v1131 = vadd.s32 %v1130, %v1120
        %v1132 = vadd.s32 %v1131, %v1122
        %v1133 = vand.u32 %v1110, 65535
        %v1134 = vshrl.u32 %v1110, 16
        %v1135 = vand.u32 %v1105, 65535
        %v1136 = vshrl.u32 %v1105, 16
        %v1137 = vmul.u32 %v1133, %v1135
        %v1138 = vmul.u32 %v1133, %v1136
        %v1139 = vmul.u32 %v1134, %v1135
        %v1140 = vmul.u32 %v1134, %v1136
        %v1141 = vshll.u32 %v1138, 16
        %v1142 = vshrl.u32 %v1138, 16
        %v1143 = vshll.u32 %v1139, 16
        %v1144 = vshrl.u32 %v1139, 16
        %vm1145 = vc.u32 %v1137, %v1141
        %v1146 = vsel %vm1145, 1, 0
        %v1147 = vadd.s32 %v1137, %v1141
        %v1148 = vadd.s32 %v1140, %v1146
        %vm1149 = vc.u32 %v1147, %v1143
        %v1150 = vsel %vm1149, 1, 0
        %v1151 = vadd.s32 %v1147, %v1143
        %v1152 = vadd.s32 %v1148, %v1150
        %v1153 = vadd.s32 %v1152, %v1142
        %v1154 = vadd.s32 %v1153, %v1144
        %v1155 = vmul.u32 %v1110, %v1101
        %v1156 = vadd.s32 %v1132, %v1151
        %vm1157 = vc.u32 %v1132, %v1151
        %v1158 = vadd.s32 %v1154, 1
        %v1159 = vsel %vm1157, %v1158, %v1154
        %v1160 = vadd.s32 %v1155, %v1159
        %v1161 = vadd.s32 %v1160, 536870912
        %v1162 = vshrl.u32 %v1161, 30
        %v1163 = vshll.u32 %v1162, 30
        %v1164 = vsub.s32 %v1160, %v1163
        %vm1165 = vcmp.lt.s32.totalorder %v1164, 0
        %v1166 = vsub.s32 0, %v1164
        %v1167 = vsel %vm1165, %v1166, %v1164
        %v1168 = vclz %v1167
        %v1169 = vsub.s32 %v1168, 2
        %vm1170 = vcmp.gt.s32.totalorder 0, %v1169
        %v1171 = vsel %vm1170, 0, %v1169
        %v1172 = vsub.s32 32, %v1171
        %v1173 = vshll.u32 %v1164, %v1171
        %v1174 = vshrl.u32 %v1156, %v1172
        %v1175 = vor.u32 %v1173, %v1174
        %v1176 = vsub.s32 4294967266, %v1171
        %v1177 = vadd.s32 %v1176, 127
        %v1178 = vshll.u32 %v1177, 23
        %v1179 = vor.u32 4788187, %v1178
        %v1180 = vand.u32 2147483647, %v1179
        %v1182 = vcvt.s32.f32 %v1175
        %v1183 = vmul.f32 %v1182, %v1180
        %v1184 = vxor.u32 %v1183, 2147483648
        %v1185 = vsel %vm1064, %v1184, %v1183
        %v1186 = vsub.s32 4, %v1162
        %v1187 = vsel %vm1064, %v1186, %v1162
        %v1188 = vsel %vm1063, %v594, %v1185
        %v1189 = vsel %vm1063, 0, %v1187
        %v1190 = vmul.f32 %v1188, %v1188
        %v1191 = vmul.f32 %v1190, -0.001358992
        %v1192 = vadd.f32 %v1191, 0.041655596
        %v1193 = vmul.f32 %v1190, %v1192
        %v1194 = vadd.f32 %v1193, -0.4999988
        %v1195 = vmul.f32 %v1190, %v1194
        %v1196 = vadd.f32 1.0, %v1195
        %v1197 = vmul.f32 %v1188, %v1188
        %v1198 = vmul.f32 %v1197, -0.00019511016
        %v1199 = vadd.f32 %v1198, 0.008332121
        %v1200 = vmul.f32 %v1197, %v1199
        %v1201 = vadd.f32 %v1200, -0.16666654
        %v1202 = vmul.f32 %v1197, %v1201
        %v1203 = vadd.f32 %v1202, 1.0
        %v1204 = vmul.f32 %v1203, %v1188
        %vm1205 = vweird.f32 %v594
        %v1206 = vadd.s32 %v1189, 3
        %v1207 = vand.u32 %v1206, 3
        %vm1208 = vcmp.lt.s32.totalorder %v1207, 2
        %vm1209 = vcmp.eq.s32.totalorder %v1207, 0
        %v1210 = vxor.u32 %v1204, 2147483648
        %v1211 = vsel %vm1209, %v1196, %v1210
        %vm1212 = vcmp.eq.s32.totalorder %v1207, 2
        %v1213 = vxor.u32 %v1196, 2147483648
        %v1214 = vsel %vm1212, %v1213, %v1204
        %v1215 = vsel %vm1208, %v1211, %v1214
        %v1216 = vsel %vm1205, nan, %v1215
        %v1217 = vand.u32 2147483647, %v595
        %vm1218 = vcmp.le.f32.partialorder %v1217, 0.7853982
        %vm1219 = vcmp.lt.s32.totalorder %v595, 0
        %v1220 = vand.u32 %v595, 2139095040
        %v1221 = vshrl.u32 %v1220, 23
        %v1222 = vsub.s32 %v1221, 127
        %v1223 = vand.u32 2147483647, %v595
        %v1224 = vand.u32 %v1223, 8388607
        %v1225 = vor.u32 %v1224, 8388608
        %v1226 = vsub.s32 0, %v1225
        %v1227 = vadd.s32 %v1222, 1
        %vm1228 = vcmp.gt.s32.totalorder %v1227, 0
        %v1229 = vsel %vm1228, %v1227, 0
        %v1230 = vshrl.u32 %v1229, 5
        %v1231 = vand.u32 %v1229, 31
        %v1232 = vsub.s32 32, %v1231
        %v1233 = vshrl.u32 683565275, %v1232
        %v1234 = vshll.u32 683565275, %v1231
        %v1235 = vshrl.u32 2475754826, %v1232
        %v1236 = vor.u32 %v1234, %v1235
        %v1237 = vshll.u32 2475754826, %v1231
        %v1238 = vshrl.u32 2131351028, %v1232
        %v1239 = vor.u32 %v1237, %v1238
        %v1240 = vshll.u32 2131351028, %v1231
        %v1241 = vshrl.u32 2102212464, %v1232
        %v1242 = vor.u32 %v1240, %v1241
        %v1243 = vshll.u32 2102212464, %v1231
        %v1244 = vshrl.u32 920167782, %v1232
        %v1245 = vor.u32 %v1243, %v1244
        %v1246 = vshll.u32 920167782, %v1231
        %v1247 = vshrl.u32 1326507024, %v1232
        %v1248 = vor.u32 %v1246, %v1247
        %vm1249 = vcmp.lt.s32.totalorder %v1230, 1
        %vm1250 = vcmp.lt.s32.totalorder %v1230, 2
        %vm1251 = vcmp.lt.s32.totalorder %v1230, 3
        %vm1252 = vcmp.lt.s32.totalorder %v1230, 4
        %v1253 = vsel %vm1249, %v1233, %v1236
        %v1254 = vsel %vm1252, %v1242, 2102212464
        %v1255 = vsel %vm1251, %v1239, %v1254
        %v1256 = vsel %vm1250, %v1253, %v1255
        %v1257 = vsel %vm1249, %v1236, %v1239
        %v1258 = vsel %vm1252, %v1245, 920167782
        %v1259 = vsel %vm1251, %v1242, %v1258
        %v1260 = vsel %vm1250, %v1257, %v1259
        %v1261 = vsel %vm1249, %v1239, %v1242
        %v1262 = vsel %vm1252, %v1248, 1326507024
        %v1263 = vsel %vm1251, %v1245, %v1262
        %v1264 = vsel %vm1250, %v1261, %v1263
        %v1265 = vshll.u32 %v1225, 8
        %v1266 = vand.u32 %v1265, 65535
        %v1267 = vshrl.u32 %v1265, 16
        %v1268 = vand.u32 %v1264, 65535
        %v1269 = vshrl.u32 %v1264, 16
        %v1270 = vmul.u32 %v1266, %v1268
        %v1271 = vmul.u32 %v1266, %v1269
        %v1272 = vmul.u32 %v1267, %v1268
        %v1273 = vmul.u32 %v1267, %v1269
        %v1274 = vshll.u32 %v1271, 16
        %v1275 = vshrl.u32 %v1271, 16
        %v1276 = vshll.u32 %v1272, 16
        %v1277 = vshrl.u32 %v1272, 16
        %vm1278 = vc.u32 %v1270, %v1274
        %v1279 = vsel %vm1278, 1, 0
        %v1280 = vadd.s32 %v1270, %v1274
        %v1281 = vadd.s32 %v1273, %v1279
        %vm1282 = vc.u32 %v1280, %v1276
        %v1283 = vsel %vm1282, 1, 0
        %v1284 = vadd.s32 %v1280, %v1276
        %v1285 = vadd.s32 %v1281, %v1283
        %v1286 = vadd.s32 %v1285, %v1275
        %v1287 = vadd.s32 %v1286, %v1277
        %v1288 = vand.u32 %v1265, 65535
        %v1289 = vshrl.u32 %v1265, 16
        %v1290 = vand.u32 %v1260, 65535
        %v1291 = vshrl.u32 %v1260, 16
        %v1292 = vmul.u32 %v1288, %v1290
        %v1293 = vmul.u32 %v1288, %v1291
        %v1294 = vmul.u32 %v1289, %v1290
        %v1295 = vmul.u32 %v1289, %v1291
        %v1296 = vshll.u32 %v1293, 16
        %v1297 = vshrl.u32 %v1293, 16
        %v1298 = vshll.u32 %v1294, 16
        %v1299 = vshrl.u32 %v1294, 16
        %vm1300 = vc.u32 %v1292, %v1296
        %v1301 = vsel %vm1300, 1, 0
        %v1302 = vadd.s32 %v1292, %v1296
        %v1303 = vadd.s32 %v1295, %v1301
        %vm1304 = vc.u32 %v1302, %v1298
        %v1305 = vsel %vm1304, 1, 0
        %v1306 = vadd.s32 %v1302, %v1298
        %v1307 = vadd.s32 %v1303, %v1305
        %v1308 = vadd.s32 %v1307, %v1297
        %v1309 = vadd.s32 %v1308, %v1299
        %v1310 = vmul.u32 %v1265, %v1256
        %v1311 = vadd.s32 %v1287, %v1306
        %vm1312 = vc.u32 %v1287, %v1306
        %v1313 = vadd.s32 %v1309, 1
        %v1314 = vsel %vm1312, %v1313, %v1309
        %v1315 = vadd.s32 %v1310, %v1314
        %v1316 = vadd.s32 %v1315, 536870912
        %v1317 = vshrl.u32 %v1316, 30
        %v1318 = vshll.u32 %v1317, 30
        %v1319 = vsub.s32 %v1315, %v1318
        %vm1320 = vcmp.lt.s32.totalorder %v1319, 0
        %v1321 = vsub.s32 0, %v1319
        %v1322 = vsel %vm1320, %v1321, %v1319
        %v1323 = vclz %v1322
        %v1324 = vsub.s32 %v1323, 2
        %vm1325 = vcmp.gt.s32.totalorder 0, %v1324
        %v1326 = vsel %vm1325, 0, %v1324
        %v1327 = vsub.s32 32, %v1326
        %v1328 = vshll.u32 %v1319, %v1326
        %v1329 = vshrl.u32 %v1311, %v1327
        %v1330 = vor.u32 %v1328, %v1329
        %v1331 = vsub.s32 4294967266, %v1326
        %v1332 = vadd.s32 %v1331, 127
        %v1333 = vshll.u32 %v1332, 23
        %v1334 = vor.u32 4788187, %v1333
        %v1335 = vand.u32 2147483647, %v1334
        %v1337 = vcvt.s32.f32 %v1330
        %v1338 = vmul.f32 %v1337, %v1335
        %v1339 = vxor.u32 %v1338, 2147483648
        %v1340 = vsel %vm1219, %v1339, %v1338
        %v1341 = vsub.s32 4, %v1317
        %v1342 = vsel %vm1219, %v1341, %v1317
        %v1343 = vsel %vm1218, %v595, %v1340
        %v1344 = vsel %vm1218, 0, %v1342
        %v1345 = vmul.f32 %v1343, %v1343
        %v1346 = vmul.f32 %v1345, -0.001358992
        %v1347 = vadd.f32 %v1346, 0.041655596
        %v1348 = vmul.f32 %v1345, %v1347
        %v1349 = vadd.f32 %v1348, -0.4999988
        %v1350 = vmul.f32 %v1345, %v1349
        %v1351 = vadd.f32 1.0, %v1350
        %v1352 = vmul.f32 %v1343, %v1343
        %v1353 = vmul.f32 %v1352, -0.00019511016
        %v1354 = vadd.f32 %v1353, 0.008332121
        %v1355 = vmul.f32 %v1352, %v1354
        %v1356 = vadd.f32 %v1355, -0.16666654
        %v1357 = vmul.f32 %v1352, %v1356
        %v1358 = vadd.f32 %v1357, 1.0
        %v1359 = vmul.f32 %v1358, %v1343
        %vm1360 = vweird.f32 %v595
        %v1361 = vadd.s32 %v1344, 3
        %v1362 = vand.u32 %v1361, 3
        %vm1363 = vcmp.lt.s32.totalorder %v1362, 2
        %vm1364 = vcmp.eq.s32.totalorder %v1362, 0
        %v1365 = vxor.u32 %v1359, 2147483648
        %v1366 = vsel %vm1364, %v1351, %v1365
        %vm1367 = vcmp.eq.s32.totalorder %v1362, 2
        %v1368 = vxor.u32 %v1351, 2147483648
        %v1369 = vsel %vm1367, %v1368, %v1359
        %v1370 = vsel %vm1363, %v1366, %v1369
        %v1371 = vsel %vm1360, nan, %v1370
        %v1372 = vand.u32 2147483647, %v596
        %vm1373 = vcmp.le.f32.partialorder %v1372, 0.7853982
        %vm1374 = vcmp.lt.s32.totalorder %v596, 0
        %v1375 = vand.u32 %v596, 2139095040
        %v1376 = vshrl.u32 %v1375, 23
        %v1377 = vsub.s32 %v1376, 127
        %v1378 = vand.u32 2147483647, %v596
        %v1379 = vand.u32 %v1378, 8388607
        %v1380 = vor.u32 %v1379, 8388608
        %v1381 = vsub.s32 0, %v1380
        %v1382 = vadd.s32 %v1377, 1
        %vm1383 = vcmp.gt.s32.totalorder %v1382, 0
        %v1384 = vsel %vm1383, %v1382, 0
        %v1385 = vshrl.u32 %v1384, 5
        %v1386 = vand.u32 %v1384, 31
        %v1387 = vsub.s32 32, %v1386
        %v1388 = vshrl.u32 683565275, %v1387
        %v1389 = vshll.u32 683565275, %v1386
        %v1390 = vshrl.u32 2475754826, %v1387
        %v1391 = vor.u32 %v1389, %v1390
        %v1392 = vshll.u32 2475754826, %v1386
        %v1393 = vshrl.u32 2131351028, %v1387
        %v1394 = vor.u32 %v1392, %v1393
        %v1395 = vshll.u32 2131351028, %v1386
        %v1396 = vshrl.u32 2102212464, %v1387
        %v1397 = vor.u32 %v1395, %v1396
        %v1398 = vshll.u32 2102212464, %v1386
        %v1399 = vshrl.u32 920167782, %v1387
        %v1400 = vor.u32 %v1398, %v1399
        %v1401 = vshll.u32 920167782, %v1386
        %v1402 = vshrl.u32 1326507024, %v1387
        %v1403 = vor.u32 %v1401, %v1402
        %vm1404 = vcmp.lt.s32.totalorder %v1385, 1
        %vm1405 = vcmp.lt.s32.totalorder %v1385, 2
        %vm1406 = vcmp.lt.s32.totalorder %v1385, 3
        %vm1407 = vcmp.lt.s32.totalorder %v1385, 4
        %v1408 = vsel %vm1404, %v1388, %v1391
        %v1409 = vsel %vm1407, %v1397, 2102212464
        %v1410 = vsel %vm1406, %v1394, %v1409
        %v1411 = vsel %vm1405, %v1408, %v1410
        %v1412 = vsel %vm1404, %v1391, %v1394
        %v1413 = vsel %vm1407, %v1400, 920167782
        %v1414 = vsel %vm1406, %v1397, %v1413
        %v1415 = vsel %vm1405, %v1412, %v1414
        %v1416 = vsel %vm1404, %v1394, %v1397
        %v1417 = vsel %vm1407, %v1403, 1326507024
        %v1418 = vsel %vm1406, %v1400, %v1417
        %v1419 = vsel %vm1405, %v1416, %v1418
        %v1420 = vshll.u32 %v1380, 8
        %v1421 = vand.u32 %v1420, 65535
        %v1422 = vshrl.u32 %v1420, 16
        %v1423 = vand.u32 %v1419, 65535
        %v1424 = vshrl.u32 %v1419, 16
        %v1425 = vmul.u32 %v1421, %v1423
        %v1426 = vmul.u32 %v1421, %v1424
        %v1427 = vmul.u32 %v1422, %v1423
        %v1428 = vmul.u32 %v1422, %v1424
        %v1429 = vshll.u32 %v1426, 16
        %v1430 = vshrl.u32 %v1426, 16
        %v1431 = vshll.u32 %v1427, 16
        %v1432 = vshrl.u32 %v1427, 16
        %vm1433 = vc.u32 %v1425, %v1429
        %v1434 = vsel %vm1433, 1, 0
        %v1435 = vadd.s32 %v1425, %v1429
        %v1436 = vadd.s32 %v1428, %v1434
        %vm1437 = vc.u32 %v1435, %v1431
        %v1438 = vsel %vm1437, 1, 0
        %v1439 = vadd.s32 %v1435, %v1431
        %v1440 = vadd.s32 %v1436, %v1438
        %v1441 = vadd.s32 %v1440, %v1430
        %v1442 = vadd.s32 %v1441, %v1432
        %v1443 = vand.u32 %v1420, 65535
        %v1444 = vshrl.u32 %v1420, 16
        %v1445 = vand.u32 %v1415, 65535
        %v1446 = vshrl.u32 %v1415, 16
        %v1447 = vmul.u32 %v1443, %v1445
        %v1448 = vmul.u32 %v1443, %v1446
        %v1449 = vmul.u32 %v1444, %v1445
        %v1450 = vmul.u32 %v1444, %v1446
        %v1451 = vshll.u32 %v1448, 16
        %v1452 = vshrl.u32 %v1448, 16
        %v1453 = vshll.u32 %v1449, 16
        %v1454 = vshrl.u32 %v1449, 16
        %vm1455 = vc.u32 %v1447, %v1451
        %v1456 = vsel %vm1455, 1, 0
        %v1457 = vadd.s32 %v1447, %v1451
        %v1458 = vadd.s32 %v1450, %v1456
        %vm1459 = vc.u32 %v1457, %v1453
        %v1460 = vsel %vm1459, 1, 0
        %v1461 = vadd.s32 %v1457, %v1453
        %v1462 = vadd.s32 %v1458, %v1460
        %v1463 = vadd.s32 %v1462, %v1452
        %v1464 = vadd.s32 %v1463, %v1454
        %v1465 = vmul.u32 %v1420, %v1411
        %v1466 = vadd.s32 %v1442, %v1461
        %vm1467 = vc.u32 %v1442, %v1461
        %v1468 = vadd.s32 %v1464, 1
        %v1469 = vsel %vm1467, %v1468, %v1464
        %v1470 = vadd.s32 %v1465, %v1469
        %v1471 = vadd.s32 %v1470, 536870912
        %v1472 = vshrl.u32 %v1471, 30
        %v1473 = vshll.u32 %v1472, 30
        %v1474 = vsub.s32 %v1470, %v1473
        %vm1475 = vcmp.lt.s32.totalorder %v1474, 0
        %v1476 = vsub.s32 0, %v1474
        %v1477 = vsel %vm1475, %v1476, %v1474
        %v1478 = vclz %v1477
        %v1479 = vsub.s32 %v1478, 2
        %vm1480 = vcmp.gt.s32.totalorder 0, %v1479
        %v1481 = vsel %vm1480, 0, %v1479
        %v1482 = vsub.s32 32, %v1481
        %v1483 = vshll.u32 %v1474, %v1481
        %v1484 = vshrl.u32 %v1466, %v1482
        %v1485 = vor.u32 %v1483, %v1484
        %v1486 = vsub.s32 4294967266, %v1481
        %v1487 = vadd.s32 %v1486, 127
        %v1488 = vshll.u32 %v1487, 23
        %v1489 = vor.u32 4788187, %v1488
        %v1490 = vand.u32 2147483647, %v1489
        %v1492 = vcvt.s32.f32 %v1485
        %v1493 = vmul.f32 %v1492, %v1490
        %v1494 = vxor.u32 %v1493, 2147483648
        %v1495 = vsel %vm1374, %v1494, %v1493
        %v1496 = vsub.s32 4, %v1472
        %v1497 = vsel %vm1374, %v1496, %v1472
        %v1498 = vsel %vm1373, %v596, %v1495
        %v1499 = vsel %vm1373, 0, %v1497
        %v1500 = vmul.f32 %v1498, %v1498
        %v1501 = vmul.f32 %v1500, -0.001358992
        %v1502 = vadd.f32 %v1501, 0.041655596
        %v1503 = vmul.f32 %v1500, %v1502
        %v1504 = vadd.f32 %v1503, -0.4999988
        %v1505 = vmul.f32 %v1500, %v1504
        %v1506 = vadd.f32 1.0, %v1505
        %v1507 = vmul.f32 %v1498, %v1498
        %v1508 = vmul.f32 %v1507, -0.00019511016
        %v1509 = vadd.f32 %v1508, 0.008332121
        %v1510 = vmul.f32 %v1507, %v1509
        %v1511 = vadd.f32 %v1510, -0.16666654
        %v1512 = vmul.f32 %v1507, %v1511
        %v1513 = vadd.f32 %v1512, 1.0
        %v1514 = vmul.f32 %v1513, %v1498
        %vm1515 = vweird.f32 %v596
        %v1516 = vadd.s32 %v1499, 3
        %v1517 = vand.u32 %v1516, 3
        %vm1518 = vcmp.lt.s32.totalorder %v1517, 2
        %vm1519 = vcmp.eq.s32.totalorder %v1517, 0
        %v1520 = vxor.u32 %v1514, 2147483648
        %v1521 = vsel %vm1519, %v1506, %v1520
        %vm1522 = vcmp.eq.s32.totalorder %v1517, 2
        %v1523 = vxor.u32 %v1506, 2147483648
        %v1524 = vsel %vm1522, %v1523, %v1514
        %v1525 = vsel %vm1518, %v1521, %v1524
        %v1526 = vsel %vm1515, nan, %v1525
        %1527 = vst [vmem:[%s425] sm:$0xff] %v751
        %1528 = vst [vmem:[%s425 + $0x8] sm:$0xff] %v906
        %1529 = vst [vmem:[%s425 + $0x10] sm:$0xff] %v1061
        %v1530 = vld [vmem:[%s436] sm:$0xff]
        %v1531 = vld [vmem:[%s436 + $0x8] sm:$0xff]
        %v1532 = vld [vmem:[%s436 + $0x10] sm:$0xff]
        %v1533 = vld [vmem:[%s436 + $0x18] sm:$0xff]
        %v1534 = vld [vmem:[%s436 + $0x20] sm:$0xff]
        %v1535 = vld [vmem:[%s436 + $0x28] sm:$0xff]
        %v1536 = vld [vmem:[%s436 + $0x30] sm:$0xff]
        %v1537 = vld [vmem:[%s436 + $0x38] sm:$0xff]
        %v1538 = vadd.f32 %v1530, %v1531
        %v1539 = vadd.f32 %v1538, %v1532
        %v1540 = vadd.f32 %v1539, %v1533
        %v1541 = vadd.f32 %v1540, %v1534
        %v1542 = vadd.f32 %v1541, %v1535
        %v1543 = vadd.f32 %v1542, %v1536
        %v1544 = vadd.f32 %v1543, %v1537
        %v1545 = vrot.slane %v1544, 4
        %v1546 = vadd.f32 %v1544, %v1545
        %v1547 = vrot.slane %v1546, 2
        %v1548 = vadd.f32 %v1546, %v1547
        %v1549 = vrot.slane %v1548, 1
        %v1550 = vadd.f32 %v1548, %v1549
        %v1551 = vrcp.pop 64.0
        %v1552 = vmul.f32 64.0, %v1551
        %v1553 = vsub.f32 1.0, %v1552
        %v1554 = vmul.f32 %v1551, %v1553
        %v1555 = vadd.f32 %v1551, %v1554
        %vm1556 = vweird.f32 %v1551
        %v1557 = vsel %vm1556, %v1551, %v1555
        %v1558 = vmul.f32 %v1550, %v1557
        %v1559 = vld [vmem:[#allocation8] sm:$0xff]
        %v1560 = vld [vmem:[#allocation8 + $0x8] sm:$0xff]
        %v1561 = vld [vmem:[#allocation8 + $0x10] sm:$0xff]
        %v1562 = vld [vmem:[#allocation8 + $0x18] sm:$0xff]
        %v1563 = vld [vmem:[#allocation8 + $0x20] sm:$0xff]
        %v1564 = vld [vmem:[#allocation8 + $0x28] sm:$0xff]
        %v1565 = vld [vmem:[#allocation8 + $0x30] sm:$0xff]
        %v1566 = vld [vmem:[#allocation8 + $0x38] sm:$0xff]
        %v1567 = vld [vmem:[#allocation8 + $0x40] sm:$0xff]
        %v1568 = vld [vmem:[#allocation8 + $0x48] sm:$0xff]
        %v1569 = vld [vmem:[#allocation8 + $0x50] sm:$0xff]
        %v1570 = vld [vmem:[#allocation8 + $0x58] sm:$0xff]
        %v1571 = vld [vmem:[#allocation8 + $0x60] sm:$0xff]
        %v1572 = vld [vmem:[#allocation8 + $0x68] sm:$0xff]
        %v1573 = vld [vmem:[#allocation8 + $0x70] sm:$0xff]
        %v1574 = vld [vmem:[#allocation8 + $0x78] sm:$0xff]
        %v1575 = vld [vmem:[#allocation8 + $0x80] sm:$0xff]
        %v1576 = vld [vmem:[#allocation8 + $0x88] sm:$0xff]
        %v1577 = vld [vmem:[#allocation8 + $0x90] sm:$0xff]
        %v1578 = vld [vmem:[#allocation8 + $0x98] sm:$0xff]
        %v1579 = vld [vmem:[#allocation8 + $0xa0] sm:$0xff]
        %v1580 = vld [vmem:[#allocation8 + $0xa8] sm:$0xff]
        %v1581 = vld [vmem:[#allocation8 + $0xb0] sm:$0xff]
        %v1582 = vld [vmem:[#allocation8 + $0xb8] sm:$0xff]
        %v1583 = vld [vmem:[#allocation8 + $0xc0] sm:$0xff]
        %v1584 = vld [vmem:[#allocation8 + $0xc8] sm:$0xff]
        %v1585 = vld [vmem:[#allocation8 + $0xd0] sm:$0xff]
        %v1586 = vld [vmem:[#allocation8 + $0xd8] sm:$0xff]
        %v1587 = vld [vmem:[#allocation8 + $0xe0] sm:$0xff]
        %v1588 = vld [vmem:[#allocation8 + $0xe8] sm:$0xff]
        %v1589 = vld [vmem:[#allocation8 + $0xf0] sm:$0xff]
        %v1590 = vld [vmem:[#allocation8 + $0xf8] sm:$0xff]
        %v1591 = vld [vmem:[#allocation8 + $0x100] sm:$0xff]
        %v1592 = vld [vmem:[#allocation8 + $0x108] sm:$0xff]
        %v1593 = vld [vmem:[#allocation8 + $0x110] sm:$0xff]
        %v1594 = vld [vmem:[#allocation8 + $0x118] sm:$0xff]
        %v1595 = vld [vmem:[#allocation8 + $0x120] sm:$0xff]
        %v1596 = vld [vmem:[#allocation8 + $0x128] sm:$0xff]
        %v1597 = vld [vmem:[#allocation8 + $0x130] sm:$0xff]
        %v1598 = vld [vmem:[#allocation8 + $0x138] sm:$0xff]
        %v1599 = vld [vmem:[#allocation8 + $0x140] sm:$0xff]
        %v1600 = vld [vmem:[#allocation8 + $0x148] sm:$0xff]
        %v1601 = vld [vmem:[#allocation8 + $0x150] sm:$0xff]
        %v1602 = vld [vmem:[#allocation8 + $0x158] sm:$0xff]
        %v1603 = vld [vmem:[#allocation8 + $0x160] sm:$0xff]
        %v1604 = vld [vmem:[#allocation8 + $0x168] sm:$0xff]
        %v1605 = vld [vmem:[#allocation8 + $0x170] sm:$0xff]
        %v1606 = vld [vmem:[#allocation8 + $0x178] sm:$0xff]
        %v1607 = vld [vmem:[#allocation8 + $0x180] sm:$0xff]
        %v1608 = vld [vmem:[#allocation8 + $0x188] sm:$0xff]
        %v1609 = vld [vmem:[#allocation8 + $0x190] sm:$0xff]
        %v1610 = vld [vmem:[#allocation8 + $0x198] sm:$0xff]
        %v1611 = vld [vmem:[#allocation8 + $0x1a0] sm:$0xff]
        %v1612 = vld [vmem:[#allocation8 + $0x1a8] sm:$0xff]
        %v1613 = vld [vmem:[#allocation8 + $0x1b0] sm:$0xff]
        %v1614 = vld [vmem:[#allocation8 + $0x1b8] sm:$0xff]
        %v1615 = vld [vmem:[#allocation8 + $0x1c0] sm:$0xff]
        %v1616 = vld [vmem:[#allocation8 + $0x1c8] sm:$0xff]
        %v1617 = vld [vmem:[#allocation8 + $0x1d0] sm:$0xff]
        %v1618 = vld [vmem:[#allocation8 + $0x1d8] sm:$0xff]
        %v1619 = vld [vmem:[#allocation8 + $0x1e0] sm:$0xff]
        %v1620 = vld [vmem:[#allocation8 + $0x1e8] sm:$0xff]
        %v1621 = vld [vmem:[#allocation8 + $0x1f0] sm:$0xff]
        %v1622 = vld [vmem:[#allocation8 + $0x1f8] sm:$0xff]
        %1623 = vmatpush.msra.mxu0 %v1590
        %1624 = vmatpush.msra.mxu0 %v1589
        %1625 = vmatpush.msra.mxu0 %v1588
        %1626 = vmatpush.msra.mxu0 %v1587
        %1627 = vmatpush.msra.mxu0 %v1586
        %1628 = vmatpush.msra.mxu0 %v1585
        %1629 = vmatpush.msra.mxu0 %v1584
        %1630 = vmatpush.msra.mxu0 %v1583
        %1631 = vmatpush.msra.mxu0 %v1582
        %1632 = vmatpush.msra.mxu0 %v1581
        %1633 = vmatpush.msra.mxu0 %v1580
        %1634 = vmatpush.msra.mxu0 %v1579
        %1635 = vmatpush.msra.mxu0 %v1578
        %1636 = vmatpush.msra.mxu0 %v1577
        %1637 = vmatpush.msra.mxu0 %v1576
        %1638 = vmatpush.msra.mxu0 %v1575
        %1639 = vmatmul.f32.gmra.mxu0 %v1216
        %v1640 = vpop.f32.mrf.mxu0
        %v1641 = vadd.f32 0.0, %v1640
        %1642 = vdwg.mxu0
        %1643 = vmatpush.msra.mxu0 %v1606
        %1644 = vmatpush.msra.mxu0 %v1605
        %1645 = vmatpush.msra.mxu0 %v1604
        %1646 = vmatpush.msra.mxu0 %v1603
        %1647 = vmatpush.msra.mxu0 %v1602
        %1648 = vmatpush.msra.mxu0 %v1601
        %1649 = vmatpush.msra.mxu0 %v1600
        %1650 = vmatpush.msra.mxu0 %v1599
        %1651 = vmatpush.msra.mxu0 %v1598
        %1652 = vmatpush.msra.mxu0 %v1597
        %1653 = vmatpush.msra.mxu0 %v1596
        %1654 = vmatpush.msra.mxu0 %v1595
        %1655 = vmatpush.msra.mxu0 %v1594
        %1656 = vmatpush.msra.mxu0 %v1593
        %1657 = vmatpush.msra.mxu0 %v1592
        %1658 = vmatpush.msra.mxu0 %v1591
        %1659 = vmatmul.f32.gmra.mxu0 %v1371
        %v1660 = vpop.f32.mrf.mxu0
        %v1661 = vadd.f32 %v1641, %v1660
        %1662 = vdwg.mxu0
        %1663 = vmatpush.msra.mxu0 %v1622
        %1664 = vmatpush.msra.mxu0 %v1621
        %1665 = vmatpush.msra.mxu0 %v1620
        %1666 = vmatpush.msra.mxu0 %v1619
        %1667 = vmatpush.msra.mxu0 %v1618
        %1668 = vmatpush.msra.mxu0 %v1617
        %1669 = vmatpush.msra.mxu0 %v1616
        %1670 = vmatpush.msra.mxu0 %v1615
        %1671 = vmatpush.msra.mxu0 %v1614
        %1672 = vmatpush.msra.mxu0 %v1613
        %1673 = vmatpush.msra.mxu0 %v1612
        %1674 = vmatpush.msra.mxu0 %v1611
        %1675 = vmatpush.msra.mxu0 %v1610
        %1676 = vmatpush.msra.mxu0 %v1609
        %1677 = vmatpush.msra.mxu0 %v1608
        %1678 = vmatpush.msra.mxu0 %v1607
        %1679 = vmatmul.f32.gmra.mxu0 %v1526
        %v1680 = vpop.f32.mrf.mxu0
        %v1681 = vadd.f32 %v1661, %v1680
        %1682 = vdwg.mxu0
        %1683 = vmatpush.msra.mxu0 %v1574
        %1684 = vmatpush.msra.mxu0 %v1573
        %1685 = vmatpush.msra.mxu0 %v1572
        %1686 = vmatpush.msra.mxu0 %v1571
        %1687 = vmatpush.msra.mxu0 %v1570
        %1688 = vmatpush.msra.mxu0 %v1569
        %1689 = vmatpush.msra.mxu0 %v1568
        %1690 = vmatpush.msra.mxu0 %v1567
        %1691 = vmatpush.msra.mxu0 %v1566
        %1692 = vmatpush.msra.mxu0 %v1565
        %1693 = vmatpush.msra.mxu0 %v1564
        %1694 = vmatpush.msra.mxu0 %v1563
        %1695 = vmatpush.msra.mxu0 %v1562
        %1696 = vmatpush.msra.mxu0 %v1561
        %1697 = vmatpush.msra.mxu0 %v1560
        %1698 = vmatpush.msra.mxu0 %v1559
        %1699 = vmatmul.f32.gmra.mxu0 %v1558
        %v1700 = vpop.f32.mrf.mxu0
        %v1701 = vadd.f32 %v1681, %v1700
        %1702 = vdwg.mxu0
        %v1703 = vld [vmem:[%s8] sm:$0x1]
        %v1704 = vadd.f32 %v1701, %v1703
        %v1705 = vmax.f32 %v1704, 0.0
        %1706 = vst [vmem:[%s431] sm:$0x1] %v1705
        %s1707 = sand.u32 %s216, 1
        %s1708 = scalar_lea.sflag [#allocation7], %s1707
        %s1709 = sand.u32 %s216, 1
        %s1710 = smul.addr %s1709, 16
        %s1711 = scalar_lea.vmem [#allocation10], %s1710
        %s1712 = sand.u32 %s46, 1
        %s1713 = scalar_lea.sflag [#allocation12], %s1712
        %s1714 = sand.u32 %s242, 1
        %s1715 = smul.addr %s1714, 24
        %s1716 = scalar_lea.vmem [#allocation11], %s1715
        %s1717 = sand.u32 %s46, 1
        %s1718 = scalar_lea.sflag [#allocation12], %s1717
        %s1719 = sand.u32 %s268, 1
        %s1720 = scalar_lea.vmem [#allocation13], %s1719
        // Predicated region
        $region57: #{tpu_custom_call.1} parent=47 // pred_check
          %p1721 = pneg %p226
        $region58: #{tpu_custom_call.1} parent=47 // pred_check_branch
          %1723 = sbr.rel (%p1721) target = $region60
        $region59: #{tpu_custom_call.1} parent=47 // pred_region
          %1725 = vsyncadd %s1708, 0
          %s1726 = smul.addr %s46, 2
          %s1727 = smul.addr %s1726, 8
          %s1728 = scalar_lea.hbm %s9, %s1727
          %s1730 = sshll.u32 %s1711, 4
          %s1731 = int_to_ptr.vmem [resolvable:$true] %s1730
          %s1732 = sshll.u32 %s1728, 4
          %s1733 = int_to_ptr.hbm [resolvable:$true] %s1732
          %1735 = dma.vmem_to_hbm [thread:$0]  %s1731, 256, %s1733, %s1708
        $region60: #{tpu_custom_call.1} parent=47 // pred_fallthru
          _
        // Predicated region
        $region61: #{tpu_custom_call.1} parent=47 // pred_check
          %p1736 = pneg %p252
        $region62: #{tpu_custom_call.1} parent=47 // pred_check_branch
          %1738 = sbr.rel (%p1736) target = $region64
        $region63: #{tpu_custom_call.1} parent=47 // pred_region
          %1740 = vsyncadd %s1713, 0
          %s1741 = smul.addr %s46, 3
          %s1742 = smul.addr %s1741, 8
          %s1743 = scalar_lea.hbm %s10, %s1742
          %s1745 = sshll.u32 %s1716, 4
          %s1746 = int_to_ptr.vmem [resolvable:$true] %s1745
          %s1747 = sshll.u32 %s1743, 4
          %s1748 = int_to_ptr.hbm [resolvable:$true] %s1747
          %1750 = dma.vmem_to_hbm [thread:$0]  %s1746, 384, %s1748, %s1713
        $region64: #{tpu_custom_call.1} parent=47 // pred_fallthru
          _
        // Predicated region
        $region65: #{tpu_custom_call.1} parent=47 // pred_check
          %p1751 = pneg %p278
        $region66: #{tpu_custom_call.1} parent=47 // pred_check_branch
          %1753 = sbr.rel (%p1751) target = $region68
        $region67: #{tpu_custom_call.1} parent=47 // pred_region
          %1755 = vsyncadd %s1718, 0
          %s1756 = scalar_lea.hbm %s11, %s46
          %s1758 = sshll.u32 %s1720, 4
          %s1759 = int_to_ptr.vmem [resolvable:$true] %s1758
          %s1760 = sshll.u32 %s1756, 4
          %s1761 = int_to_ptr.hbm [resolvable:$true] %s1760
          %1763 = dma.vmem_to_hbm [thread:$0]  %s1759, 16, %s1761, %s1718
        $region68: #{tpu_custom_call.1} parent=47 // pred_fallthru
          _
      $region48: #{tpu_custom_call.1} parent=5 // pred_fallthru
        _
      %p1764 = scmp.le.s32.totalorder 2, %s41
      // Predicated region
      $region69: #{tpu_custom_call.1} parent=5 // pred_check
        %p1765 = pneg %p1764
      $region70: #{tpu_custom_call.1} parent=5 // pred_check_branch
        %1767 = sbr.rel (%p1765) target = $region72
      $region71: #{tpu_custom_call.1} parent=5 // pred_region
        %s1768 = ssub.s32 %s41, 2
        // Predicated region
        $region73: #{tpu_custom_call.1} parent=71 // pred_check
          %p1769 = pneg %p232
        $region74: #{tpu_custom_call.1} parent=71 // pred_check_branch
          %1771 = sbr.rel (%p1769) target = $region76
        $region75: #{tpu_custom_call.1} parent=71 // pred_region
          %s1772 = sand.u32 %s217, 1
          %s1773 = scalar_lea.sflag [#allocation7], %s1772
          %s1774 = sand.u32 %s217, 1
          %s1775 = smul.addr %s1774, 16
          %s1776 = scalar_lea.vmem [#allocation10], %s1775
          %1778 = dma.done %s1773, 256
        $region76: #{tpu_custom_call.1} parent=71 // pred_fallthru
          _
        // Predicated region
        $region77: #{tpu_custom_call.1} parent=71 // pred_check
          %p1779 = pneg %p258
        $region78: #{tpu_custom_call.1} parent=71 // pred_check_branch
          %1781 = sbr.rel (%p1779) target = $region80
        $region79: #{tpu_custom_call.1} parent=71 // pred_region
          %s1782 = sand.u32 %s47, 1
          %s1783 = scalar_lea.sflag [#allocation12], %s1782
          %s1784 = sand.u32 %s243, 1
          %s1785 = smul.addr %s1784, 24
          %s1786 = scalar_lea.vmem [#allocation11], %s1785
          %1788 = dma.done %s1783, 384
        $region80: #{tpu_custom_call.1} parent=71 // pred_fallthru
          _
        // Predicated region
        $region81: #{tpu_custom_call.1} parent=71 // pred_check
          %p1789 = pneg %p284
        $region82: #{tpu_custom_call.1} parent=71 // pred_check_branch
          %1791 = sbr.rel (%p1789) target = $region84
        $region83: #{tpu_custom_call.1} parent=71 // pred_region
          %s1792 = sand.u32 %s47, 1
          %s1793 = scalar_lea.sflag [#allocation12], %s1792
          %s1794 = sand.u32 %s269, 1
          %s1795 = scalar_lea.vmem [#allocation13], %s1794
          %1797 = dma.done %s1793, 16
        $region84: #{tpu_custom_call.1} parent=71 // pred_fallthru
          _
      $region72: #{tpu_custom_call.1} parent=5 // pred_fallthru
        _
    $region6: #{tpu_custom_call.1} parent=1 // loop_footer
      %s45 = sadd.s32 1, %s41
    $region7: #{tpu_custom_call.1} parent=1 // loop_footer_branch
      %40 = sbr.rel target = $region3
    $region8: #{tpu_custom_call.1} parent=1 // loop_exit
      _
    %1798 = vsyncpa [#allocation6], 1
    %s1799 = scalar_lea.sflag [#allocation6], 1
    %1800 = vsyncpa %s1799, 1
    %1801 = vsyncpa [#allocation9], 1
    %1802 = vsyncpa [#allocation7], 1
    %s1803 = scalar_lea.sflag [#allocation7], 1
    %1804 = vsyncpa %s1803, 1
    %1805 = vsyncpa [#allocation12], 1
    %s1806 = scalar_lea.sflag [#allocation12], 1
    %1807 = vsyncpa %s1806, 1

</llo_original>
